<compile_context>
chip_gen: v7x
topology: tpu7x:2x2x1
jax: 0.10.0
libtpu: 0.0.40
codegen_flags: <defaults>
</compile_context>

<pallas_src>
import functools

import numpy as np
import jax
import jax.numpy as jnp
from jax import lax
from jax.experimental import pallas as pl
from jax.experimental.pallas import tpu as pltpu


def _block_kernel(x_ref, mask_ref, wc_ref, bc_ref, wb_ref, bb_ref,
                  t1_ref, t2_ref, out_ref, patch_ref, *,
                  offsets, c_in, width, n_lanes, do_pool, pool_shift):
    """One grid step = one batch tile; images concatenated along lanes.

    x_ref    : (1, C_in, N)       raw input, channel-major, N = Bt*H*W
    mask_ref : (27, N)            0/1 boundary masks, one row per (dil,ky,kx)
    wc_ref   : (18, 108)  bf16    fused block-diagonal dilated-conv weight
    bc_ref   : (18, 1)            fused conv bias
    wb_ref   : (19, 18)   bf16    fused branch1 (rows 0..17) + branch2 (row 18)
    bb_ref   : (19, 1)            fused branch bias
    t1_ref   : (N, Bt*S)  bf16    block-diag projection pooling (masked mean)
    t2_ref   : (Bt*S, N)  bf16    block-diag broadcast back
    out_ref  : (1, 37, N)         [b1 | out1 | sigmoid(b2)]
    patch_ref: (108, N)           im2col scratch built with lane rolls
    """
    xv = x_ref[0]                                                 # (C_in, N)

    # ---- in-kernel im2col: lane roll + boundary mask per (dil, ky, kx) ----
    for j, (dy, dx) in enumerate(offsets):
        s = dy * width + dx
        v = xv if s == 0 else pltpu.roll(xv, shift=(-s) % n_lanes, axis=1)
        if s != 0:
            v = v * mask_ref[j:j + 1, :]          # zero out-of-image taps
        patch_ref[j * c_in:(j + 1) * c_in, :] = v

    # ---- three dilated 3x3 convs == ONE bf16 MXU matmul over the tile -----
    out1 = jnp.dot(wc_ref[...], patch_ref[...].astype(jnp.bfloat16),
                   preferred_element_type=jnp.float32) + bc_ref[...]

    if do_pool:
        # MaxPool2d((1,2)) / ((2,1)), stride 1: neighbour is +1 / +W lanes.
        # Roll wrap / cross-row / cross-image bleed only lands in the column
        # (or row) that the wrapper slices off and that T1 masks out.
        nbr = pltpu.roll(out1, shift=(-pool_shift) % n_lanes, axis=1)
        out1 = jnp.maximum(out1, nbr)

    # ---- branch 1x1 convs + projection pooling (reassociated) -------------
    # (wb @ out1 + bb) @ T1 == wb @ (out1 @ T1) + bb  since T1 columns sum to 1
    seg = jnp.dot(out1.astype(jnp.bfloat16), t1_ref[...],
                  preferred_element_type=jnp.float32)             # (18, Bt*S)
    segb = jnp.dot(wb_ref[...], seg.astype(jnp.bfloat16),
                   preferred_element_type=jnp.float32) + bb_ref[...]
    proj = jnp.dot(segb.astype(jnp.bfloat16), t2_ref[...],
                   preferred_element_type=jnp.float32)            # (19, N)
    b2 = pl.reciprocal(1.0 + jnp.exp(-proj[18:19, :]), approx=True)

    # torch.cat([b1, out1, b2], dim=1) -> one dense (37, N) store
    out_ref[0] = jnp.concatenate([proj[0:18, :], out1, b2], axis=0)


def _pick_batch_tile(batch, cap=16):
    """Largest divisor of `batch` <= cap, preferring >=2 grid steps (v7x)."""
    target = max(1, min(cap, batch // 2)) if batch >= 2 else 1
    for bt in range(target, 0, -1):
        if batch % bt == 0:
            return bt
    return 1


@functools.partial(jax.jit, static_argnames=("index", "row_column"))
def block_forward(x, params, *, index, row_column):
    """JAX/Pallas equivalent of Block.forward; returns (output, b2)."""
    B, C_in, H, W = x.shape
    HW = H * W
    Bt = _pick_batch_tile(B)
    Ng = B // Bt
    N = Bt * HW
    K = 27 * C_in

    # raw input: channel-major, tile images concatenated along the lane axis
    x_tile = (x.astype(jnp.float32)
                .reshape(Ng, Bt, C_in, HW)
                .transpose(0, 2, 1, 3)
                .reshape(Ng, C_in, N))

    # ---- static tap offsets + boundary masks (numpy, trace time) ----------
    offsets = []
    for d in (2, 3, 4):
        for ky in range(3):
            for kx in range(3):
                offsets.append(((ky - 1) * d, (kx - 1) * d))
    yy = np.arange(HW) // W
    xx = np.arange(HW) % W
    mask_np = np.stack(
        [np.tile(((yy + dy >= 0) & (yy + dy < H) &
                  (xx + dx >= 0) & (xx + dx < W)).astype(np.float32), Bt)
         for dy, dx in offsets], axis=0)                          # (27, N)
    masks = jnp.asarray(mask_np)

    # ---- fused block-diagonal conv weight / bias ---------------------------
    # patch row = (d_idx*9 + ky*3 + kx) * C_in + c  ->  matching column order
    wc = jnp.zeros((18, K), jnp.float32)
    for di, name in enumerate(("conv1", "conv2", "conv3")):
        w = params["w_" + name].astype(jnp.float32)               # (6,C_in,3,3)
        blk = jnp.transpose(w, (0, 2, 3, 1)).reshape(6, 9 * C_in)
        wc = wc.at[di * 6:(di + 1) * 6,
                   di * 9 * C_in:(di + 1) * 9 * C_in].set(blk)
    wc = wc.astype(jnp.bfloat16)
    bc = jnp.concatenate([params["b_conv1"], params["b_conv2"],
                          params["b_conv3"]]).astype(jnp.float32).reshape(18, 1)

    # ---- fused branch1 + branch2 1x1 conv weight / bias --------------------
    wb = jnp.concatenate([params["w_branch1"].reshape(18, 18),
                          params["w_branch2"].reshape(1, 18)],
                         axis=0).astype(jnp.bfloat16)             # (19, 18)
    bb = jnp.concatenate([params["b_branch1"], params["b_branch2"]]
                         ).astype(jnp.float32).reshape(19, 1)

    # ---- projection pooling as block-diagonal constant matmuls ------------
    if row_column == 0:            # mean over the width of every row
        S, seg_of = H, yy
        valid = (xx <= W - 2) if index <= 3 else np.ones(HW, bool)
        denom = float(W - 1 if index <= 3 else W)
    else:                          # mean over the height of every column
        S, seg_of = W, xx
        valid = (yy <= H - 2) if index <= 3 else np.ones(HW, bool)
        denom = float(H - 1 if index <= 3 else H)
    onehot = seg_of[:, None] == np.arange(S)[None, :]             # (HW, S)
    t1_img = (onehot & valid[:, None]).astype(np.float32) / denom
    t2_img = onehot.T.astype(np.float32)
    eye = np.eye(Bt, dtype=np.float32)
    t1 = jnp.asarray(np.kron(eye, t1_img), dtype=jnp.bfloat16)    # (N, Bt*S)
    t2 = jnp.asarray(np.kron(eye, t2_img), dtype=jnp.bfloat16)    # (Bt*S, N)

    # ---- pallas call: batch-tiled grid, constants VMEM-resident -----------
    kernel = functools.partial(
        _block_kernel, offsets=tuple(offsets), c_in=C_in, width=W,
        n_lanes=N, do_pool=(index <= 3),
        pool_shift=(1 if row_column == 0 else W))
    const = lambda g: (0, 0)
    out_tile = pl.pallas_call(
        kernel,
        out_shape=jax.ShapeDtypeStruct((Ng, 37, N), jnp.float32),
        grid=(Ng,),
        in_specs=[
            pl.BlockSpec((1, C_in, N), lambda g: (g, 0, 0)),
            pl.BlockSpec((27, N), const),
            pl.BlockSpec((18, K), const),
            pl.BlockSpec((18, 1), const),
            pl.BlockSpec((19, 18), const),
            pl.BlockSpec((19, 1), const),
            pl.BlockSpec((N, Bt * S), const),
            pl.BlockSpec((Bt * S, N), const),
        ],
        out_specs=pl.BlockSpec((1, 37, N), lambda g: (g, 0, 0)),
        scratch_shapes=[pltpu.VMEM((K, N), jnp.float32)],
        compiler_params=pltpu.CompilerParams(
            dimension_semantics=("parallel",)),
    )(x_tile, masks, wc, bc, wb, bb, t1, t2)

    # un-interleave the tile-lane layout back to NCHW; drop pooled col / row
    out = (out_tile.reshape(Ng, 37, Bt, H, W)
                   .transpose(0, 2, 1, 3, 4)
                   .reshape(B, 37, H, W))
    if index <= 3:
        out = out[:, :, :, :W - 1] if row_column == 0 else out[:, :, :H - 1, :]
    b2 = out[:, 36:37]             # sigmoid(branch2) channel (no duplicate DMA)
    return out, b2


def init_params(key, in_channels):
    """Deterministic synthetic parameters (PyTorch-style uniform init)."""
    ks = jax.random.split(key, 10)

    def u(k, shape, fan_in):
        bound = 1.0 / np.sqrt(fan_in)
        return jax.random.uniform(k, shape, jnp.float32,
                                  minval=-bound, maxval=bound)

    fi3 = in_channels * 9
    return {
        'w_conv1': u(ks[0], (6, in_channels, 3, 3), fi3),
        'b_conv1': u(ks[1], (6,), fi3),
        'w_conv2': u(ks[2], (6, in_channels, 3, 3), fi3),
        'b_conv2': u(ks[3], (6,), fi3),
        'w_conv3': u(ks[4], (6, in_channels, 3, 3), fi3),
        'b_conv3': u(ks[5], (6,), fi3),
        'w_branch1': u(ks[6], (18, 18, 1, 1), 18),
        'b_branch1': u(ks[7], (18,), 18),
        'w_branch2': u(ks[8], (1, 18, 1, 1), 18),
        'b_branch2': u(ks[9], (1,), 18),
    }


def reference_forward(x, p, *, index, row_column):
    """Pure-JAX reference reproducing the PyTorch forward."""
    dn = ('NCHW', 'OIHW', 'NCHW')
    prec = lax.Precision.HIGHEST

    def dconv(w, b, d):
        y = lax.conv_general_dilated(x, w, (1, 1), ((d, d), (d, d)),
                                     rhs_dilation=(d, d),
                                     dimension_numbers=dn, precision=prec)
        return y + b.reshape(1, -1, 1, 1)

    out1 = jnp.concatenate([dconv(p['w_conv1'], p['b_conv1'], 2),
                            dconv(p['w_conv2'], p['b_conv2'], 3),
                            dconv(p['w_conv3'], p['b_conv3'], 4)], axis=1)
    if index <= 3:
        if row_column == 0:
            out1 = jnp.maximum(out1[..., :-1], out1[..., 1:])
        else:
            out1 = jnp.maximum(out1[..., :-1, :], out1[..., 1:, :])

    def c1x1(w, b):
        y = lax.conv_general_dilated(out1, w, (1, 1), 'VALID',
                                     dimension_numbers=dn, precision=prec)
        return y + b.reshape(1, -1, 1, 1)

    b1 = c1x1(p['w_branch1'], p['b_branch1'])
    b2 = c1x1(p['w_branch2'], p['b_branch2'])
    axis = 3 if row_column == 0 else 2
    b1 = jnp.broadcast_to(jnp.mean(b1, axis=axis, keepdims=True), b1.shape)
    b2 = jnp.broadcast_to(jnp.mean(b2, axis=axis, keepdims=True), b2.shape)
    b2 = jax.nn.sigmoid(b2)
    return jnp.concatenate([b1, out1, b2], axis=1), b2


if __name__ == "__main__":
    B, C_in, H, W = 2, 4, 16, 16
    key = jax.random.PRNGKey(0)
    kx, kp = jax.random.split(key)
    x = jax.random.normal(kx, (B, C_in, H, W), dtype=jnp.float32)
    params = init_params(kp, C_in)

    # exercise all code paths: maxpool row / maxpool column / no maxpool
    for index, row_column in [(1, 0), (1, 1), (5, 0)]:
        out, b2 = block_forward(x, params, index=index, row_column=row_column)
        out = jax.block_until_ready(out)
        b2 = jax.block_until_ready(b2)

        ref_out, ref_b2 = reference_forward(x, params, index=index,
                                            row_column=row_column)
        if index <= 3:
            exp = (B, 37, H, W - 1) if row_column == 0 else (B, 37, H - 1, W)
        else:
            exp = (B, 37, H, W)
        assert out.shape == exp, (out.shape, exp)
        assert b2.shape == (B, 1) + exp[2:], b2.shape
        # Tolerance accommodates bf16 MXU operands (f32 accumulation) vs the
        # HIGHEST-precision XLA conv reference; semantic errors are O(0.1+).
        np.testing.assert_allclose(np.asarray(out), np.asarray(ref_out),
                                   rtol=2e-2, atol=2e-2)
        np.testing.assert_allclose(np.asarray(b2), np.asarray(ref_b2),
                                   rtol=2e-2, atol=2e-2)
    print("KERNEL_OK")
</pallas_src>

<mosaic_0001>
module attributes {stable_mosaic.version = 11 : i64} {
  func.func @_block_kernel(%arg0: i32, %arg1: memref<1x4x256xf32, #tpu.memory_space<vmem>>, %arg2: memref<27x256xf32, #tpu.memory_space<vmem>>, %arg3: memref<18x108xbf16, #tpu.memory_space<vmem>>, %arg4: memref<18x1xf32, #tpu.memory_space<vmem>>, %arg5: memref<19x18xbf16, #tpu.memory_space<vmem>>, %arg6: memref<19x1xf32, #tpu.memory_space<vmem>>, %arg7: memref<256x16xbf16, #tpu.memory_space<vmem>>, %arg8: memref<16x256xbf16, #tpu.memory_space<vmem>>, %arg9: memref<1x37x256xf32, #tpu.memory_space<vmem>>, %arg10: memref<108x256xf32, #tpu.memory_space<vmem>>) attributes {dimension_semantics = [#tpu.dimension_semantics<parallel>], iteration_bounds = array<i64: 2>, scalar_prefetch = 0 : i64, scratch_operands = 1 : i64, tpu.core_type = #tpu.core_type<tc>, window_params = [{transform_indices = @transform_0, window_bounds = array<i64: 1, 4, 256>}, {pipeline_mode = #tpu.pipeline_mode<synchronous>, transform_indices = @transform_1, window_bounds = array<i64: 27, 256>}, {pipeline_mode = #tpu.pipeline_mode<synchronous>, transform_indices = @transform_2, window_bounds = array<i64: 18, 108>}, {pipeline_mode = #tpu.pipeline_mode<synchronous>, transform_indices = @transform_3, window_bounds = array<i64: 18, 1>}, {pipeline_mode = #tpu.pipeline_mode<synchronous>, transform_indices = @transform_4, window_bounds = array<i64: 19, 18>}, {pipeline_mode = #tpu.pipeline_mode<synchronous>, transform_indices = @transform_5, window_bounds = array<i64: 19, 1>}, {pipeline_mode = #tpu.pipeline_mode<synchronous>, transform_indices = @transform_6, window_bounds = array<i64: 256, 16>}, {pipeline_mode = #tpu.pipeline_mode<synchronous>, transform_indices = @transform_7, window_bounds = array<i64: 16, 256>}, {transform_indices = @transform_8, window_bounds = array<i64: 1, 37, 256>}]} {
    %c0 = arith.constant 0 : index
    %c0_0 = arith.constant 0 : index
    %c0_1 = arith.constant 0 : index
    %0 = vector.load %arg1[%c0, %c0_0, %c0_1] : memref<1x4x256xf32, #tpu.memory_space<vmem>>, vector<1x4x256xf32>
    %1 = vector.shape_cast %0 : vector<1x4x256xf32> to vector<4x256xf32>
    %c34_i32 = arith.constant 34 : i32
    %2 = tpu.dynamic_rotate %1 by %c34_i32 dim 1 : vector<4x256xf32>, i32 -> vector<4x256xf32>
    %c0_2 = arith.constant 0 : index
    %c0_3 = arith.constant 0 : index
    %3 = vector.load %arg2[%c0_2, %c0_3] : memref<27x256xf32, #tpu.memory_space<vmem>>, vector<1x256xf32>
    %4 = vector.broadcast %3 : vector<1x256xf32> to vector<4x256xf32>
    %5 = arith.mulf %2, %4 : vector<4x256xf32>
    %c0_4 = arith.constant 0 : index
    %c0_5 = arith.constant 0 : index
    %6 = vector.load %arg10[%c0_4, %c0_5] : memref<108x256xf32, #tpu.memory_space<vmem>>, vector<4x256xf32>
    tpu.vector_store %arg10[%c0_4, %c0_5], %5 {strides = array<i32>} : memref<108x256xf32, #tpu.memory_space<vmem>>, vector<4x256xf32>,
    %c32_i32 = arith.constant 32 : i32
    %7 = tpu.dynamic_rotate %1 by %c32_i32 dim 1 : vector<4x256xf32>, i32 -> vector<4x256xf32>
    %c1 = arith.constant 1 : index
    %c0_6 = arith.constant 0 : index
    %8 = vector.load %arg2[%c1, %c0_6] : memref<27x256xf32, #tpu.memory_space<vmem>>, vector<1x256xf32>
    %9 = vector.broadcast %8 : vector<1x256xf32> to vector<4x256xf32>
    %10 = arith.mulf %7, %9 : vector<4x256xf32>
    %c4 = arith.constant 4 : index
    %c0_7 = arith.constant 0 : index
    %11 = vector.load %arg10[%c4, %c0_7] : memref<108x256xf32, #tpu.memory_space<vmem>>, vector<4x256xf32>
    tpu.vector_store %arg10[%c4, %c0_7], %10 {strides = array<i32>} : memref<108x256xf32, #tpu.memory_space<vmem>>, vector<4x256xf32>,
    %c30_i32 = arith.constant 30 : i32
    %12 = tpu.dynamic_rotate %1 by %c30_i32 dim 1 : vector<4x256xf32>, i32 -> vector<4x256xf32>
    %c2 = arith.constant 2 : index
    %c0_8 = arith.constant 0 : index
    %13 = vector.load %arg2[%c2, %c0_8] : memref<27x256xf32, #tpu.memory_space<vmem>>, vector<1x256xf32>
    %14 = vector.broadcast %13 : vector<1x256xf32> to vector<4x256xf32>
    %15 = arith.mulf %12, %14 : vector<4x256xf32>
    %c8 = arith.constant 8 : index
    %c0_9 = arith.constant 0 : index
    %16 = vector.load %arg10[%c8, %c0_9] : memref<108x256xf32, #tpu.memory_space<vmem>>, vector<4x256xf32>
    tpu.vector_store %arg10[%c8, %c0_9], %15 {strides = array<i32>} : memref<108x256xf32, #tpu.memory_space<vmem>>, vector<4x256xf32>,
    %c2_i32 = arith.constant 2 : i32
    %17 = tpu.dynamic_rotate %1 by %c2_i32 dim 1 : vector<4x256xf32>, i32 -> vector<4x256xf32>
    %c3 = arith.constant 3 : index
    %c0_10 = arith.constant 0 : index
    %18 = vector.load %arg2[%c3, %c0_10] : memref<27x256xf32, #tpu.memory_space<vmem>>, vector<1x256xf32>
    %19 = vector.broadcast %18 : vector<1x256xf32> to vector<4x256xf32>
    %20 = arith.mulf %17, %19 : vector<4x256xf32>
    %c12 = arith.constant 12 : index
    %c0_11 = arith.constant 0 : index
    %21 = vector.load %arg10[%c12, %c0_11] : memref<108x256xf32, #tpu.memory_space<vmem>>, vector<4x256xf32>
    tpu.vector_store %arg10[%c12, %c0_11], %20 {strides = array<i32>} : memref<108x256xf32, #tpu.memory_space<vmem>>, vector<4x256xf32>,
    %c16 = arith.constant 16 : index
    %c0_12 = arith.constant 0 : index
    %22 = vector.load %arg10[%c16, %c0_12] : memref<108x256xf32, #tpu.memory_space<vmem>>, vector<4x256xf32>
    tpu.vector_store %arg10[%c16, %c0_12], %1 {strides = array<i32>} : memref<108x256xf32, #tpu.memory_space<vmem>>, vector<4x256xf32>,
    %c254_i32 = arith.constant 254 : i32
    %23 = tpu.dynamic_rotate %1 by %c254_i32 dim 1 : vector<4x256xf32>, i32 -> vector<4x256xf32>
    %c5 = arith.constant 5 : index
    %c0_13 = arith.constant 0 : index
    %24 = vector.load %arg2[%c5, %c0_13] : memref<27x256xf32, #tpu.memory_space<vmem>>, vector<1x256xf32>
    %25 = vector.broadcast %24 : vector<1x256xf32> to vector<4x256xf32>
    %26 = arith.mulf %23, %25 : vector<4x256xf32>
    %c20 = arith.constant 20 : index
    %c0_14 = arith.constant 0 : index
    %27 = vector.load %arg10[%c20, %c0_14] : memref<108x256xf32, #tpu.memory_space<vmem>>, vector<4x256xf32>
    tpu.vector_store %arg10[%c20, %c0_14], %26 {strides = array<i32>} : memref<108x256xf32, #tpu.memory_space<vmem>>, vector<4x256xf32>,
    %c226_i32 = arith.constant 226 : i32
    %28 = tpu.dynamic_rotate %1 by %c226_i32 dim 1 : vector<4x256xf32>, i32 -> vector<4x256xf32>
    %c6 = arith.constant 6 : index
    %c0_15 = arith.constant 0 : index
    %29 = vector.load %arg2[%c6, %c0_15] : memref<27x256xf32, #tpu.memory_space<vmem>>, vector<1x256xf32>
    %30 = vector.broadcast %29 : vector<1x256xf32> to vector<4x256xf32>
    %31 = arith.mulf %28, %30 : vector<4x256xf32>
    %c24 = arith.constant 24 : index
    %c0_16 = arith.constant 0 : index
    %32 = vector.load %arg10[%c24, %c0_16] : memref<108x256xf32, #tpu.memory_space<vmem>>, vector<4x256xf32>
    tpu.vector_store %arg10[%c24, %c0_16], %31 {strides = array<i32>} : memref<108x256xf32, #tpu.memory_space<vmem>>, vector<4x256xf32>,
    %c224_i32 = arith.constant 224 : i32
    %33 = tpu.dynamic_rotate %1 by %c224_i32 dim 1 : vector<4x256xf32>, i32 -> vector<4x256xf32>
    %c7 = arith.constant 7 : index
    %c0_17 = arith.constant 0 : index
    %34 = vector.load %arg2[%c7, %c0_17] : memref<27x256xf32, #tpu.memory_space<vmem>>, vector<1x256xf32>
    %35 = vector.broadcast %34 : vector<1x256xf32> to vector<4x256xf32>
    %36 = arith.mulf %33, %35 : vector<4x256xf32>
    %c28 = arith.constant 28 : index
    %c0_18 = arith.constant 0 : index
    %37 = vector.load %arg10[%c28, %c0_18] : memref<108x256xf32, #tpu.memory_space<vmem>>, vector<4x256xf32>
    tpu.vector_store %arg10[%c28, %c0_18], %36 {strides = array<i32>} : memref<108x256xf32, #tpu.memory_space<vmem>>, vector<4x256xf32>,
    %c222_i32 = arith.constant 222 : i32
    %38 = tpu.dynamic_rotate %1 by %c222_i32 dim 1 : vector<4x256xf32>, i32 -> vector<4x256xf32>
    %c8_19 = arith.constant 8 : index
    %c0_20 = arith.constant 0 : index
    %39 = vector.load %arg2[%c8_19, %c0_20] : memref<27x256xf32, #tpu.memory_space<vmem>>, vector<1x256xf32>
    %40 = vector.broadcast %39 : vector<1x256xf32> to vector<4x256xf32>
    %41 = arith.mulf %38, %40 : vector<4x256xf32>
    %c32 = arith.constant 32 : index
    %c0_21 = arith.constant 0 : index
    %42 = vector.load %arg10[%c32, %c0_21] : memref<108x256xf32, #tpu.memory_space<vmem>>, vector<4x256xf32>
    tpu.vector_store %arg10[%c32, %c0_21], %41 {strides = array<i32>} : memref<108x256xf32, #tpu.memory_space<vmem>>, vector<4x256xf32>,
    %c51_i32 = arith.constant 51 : i32
    %43 = tpu.dynamic_rotate %1 by %c51_i32 dim 1 : vector<4x256xf32>, i32 -> vector<4x256xf32>
    %c9 = arith.constant 9 : index
    %c0_22 = arith.constant 0 : index
    %44 = vector.load %arg2[%c9, %c0_22] : memref<27x256xf32, #tpu.memory_space<vmem>>, vector<1x256xf32>
    %45 = vector.broadcast %44 : vector<1x256xf32> to vector<4x256xf32>
    %46 = arith.mulf %43, %45 : vector<4x256xf32>
    %c36 = arith.constant 36 : index
    %c0_23 = arith.constant 0 : index
    %47 = vector.load %arg10[%c36, %c0_23] : memref<108x256xf32, #tpu.memory_space<vmem>>, vector<4x256xf32>
    tpu.vector_store %arg10[%c36, %c0_23], %46 {strides = array<i32>} : memref<108x256xf32, #tpu.memory_space<vmem>>, vector<4x256xf32>,
    %c48_i32 = arith.constant 48 : i32
    %48 = tpu.dynamic_rotate %1 by %c48_i32 dim 1 : vector<4x256xf32>, i32 -> vector<4x256xf32>
    %c10 = arith.constant 10 : index
    %c0_24 = arith.constant 0 : index
    %49 = vector.load %arg2[%c10, %c0_24] : memref<27x256xf32, #tpu.memory_space<vmem>>, vector<1x256xf32>
    %50 = vector.broadcast %49 : vector<1x256xf32> to vector<4x256xf32>
    %51 = arith.mulf %48, %50 : vector<4x256xf32>
    %c40 = arith.constant 40 : index
    %c0_25 = arith.constant 0 : index
    %52 = vector.load %arg10[%c40, %c0_25] : memref<108x256xf32, #tpu.memory_space<vmem>>, vector<4x256xf32>
    tpu.vector_store %arg10[%c40, %c0_25], %51 {strides = array<i32>} : memref<108x256xf32, #tpu.memory_space<vmem>>, vector<4x256xf32>,
    %c45_i32 = arith.constant 45 : i32
    %53 = tpu.dynamic_rotate %1 by %c45_i32 dim 1 : vector<4x256xf32>, i32 -> vector<4x256xf32>
    %c11 = arith.constant 11 : index
    %c0_26 = arith.constant 0 : index
    %54 = vector.load %arg2[%c11, %c0_26] : memref<27x256xf32, #tpu.memory_space<vmem>>, vector<1x256xf32>
    %55 = vector.broadcast %54 : vector<1x256xf32> to vector<4x256xf32>
    %56 = arith.mulf %53, %55 : vector<4x256xf32>
    %c44 = arith.constant 44 : index
    %c0_27 = arith.constant 0 : index
    %57 = vector.load %arg10[%c44, %c0_27] : memref<108x256xf32, #tpu.memory_space<vmem>>, vector<4x256xf32>
    tpu.vector_store %arg10[%c44, %c0_27], %56 {strides = array<i32>} : memref<108x256xf32, #tpu.memory_space<vmem>>, vector<4x256xf32>,
    %c3_i32 = arith.constant 3 : i32
    %58 = tpu.dynamic_rotate %1 by %c3_i32 dim 1 : vector<4x256xf32>, i32 -> vector<4x256xf32>
    %c12_28 = arith.constant 12 : index
    %c0_29 = arith.constant 0 : index
    %59 = vector.load %arg2[%c12_28, %c0_29] : memref<27x256xf32, #tpu.memory_space<vmem>>, vector<1x256xf32>
    %60 = vector.broadcast %59 : vector<1x256xf32> to vector<4x256xf32>
    %61 = arith.mulf %58, %60 : vector<4x256xf32>
    %c48 = arith.constant 48 : index
    %c0_30 = arith.constant 0 : index
    %62 = vector.load %arg10[%c48, %c0_30] : memref<108x256xf32, #tpu.memory_space<vmem>>, vector<4x256xf32>
    tpu.vector_store %arg10[%c48, %c0_30], %61 {strides = array<i32>} : memref<108x256xf32, #tpu.memory_space<vmem>>, vector<4x256xf32>,
    %c52 = arith.constant 52 : index
    %c0_31 = arith.constant 0 : index
    %63 = vector.load %arg10[%c52, %c0_31] : memref<108x256xf32, #tpu.memory_space<vmem>>, vector<4x256xf32>
    tpu.vector_store %arg10[%c52, %c0_31], %1 {strides = array<i32>} : memref<108x256xf32, #tpu.memory_space<vmem>>, vector<4x256xf32>,
    %c253_i32 = arith.constant 253 : i32
    %64 = tpu.dynamic_rotate %1 by %c253_i32 dim 1 : vector<4x256xf32>, i32 -> vector<4x256xf32>
    %c14 = arith.constant 14 : index
    %c0_32 = arith.constant 0 : index
    %65 = vector.load %arg2[%c14, %c0_32] : memref<27x256xf32, #tpu.memory_space<vmem>>, vector<1x256xf32>
    %66 = vector.broadcast %65 : vector<1x256xf32> to vector<4x256xf32>
    %67 = arith.mulf %64, %66 : vector<4x256xf32>
    %c56 = arith.constant 56 : index
    %c0_33 = arith.constant 0 : index
    %68 = vector.load %arg10[%c56, %c0_33] : memref<108x256xf32, #tpu.memory_space<vmem>>, vector<4x256xf32>
    tpu.vector_store %arg10[%c56, %c0_33], %67 {strides = array<i32>} : memref<108x256xf32, #tpu.memory_space<vmem>>, vector<4x256xf32>,
    %c211_i32 = arith.constant 211 : i32
    %69 = tpu.dynamic_rotate %1 by %c211_i32 dim 1 : vector<4x256xf32>, i32 -> vector<4x256xf32>
    %c15 = arith.constant 15 : index
    %c0_34 = arith.constant 0 : index
    %70 = vector.load %arg2[%c15, %c0_34] : memref<27x256xf32, #tpu.memory_space<vmem>>, vector<1x256xf32>
    %71 = vector.broadcast %70 : vector<1x256xf32> to vector<4x256xf32>
    %72 = arith.mulf %69, %71 : vector<4x256xf32>
    %c60 = arith.constant 60 : index
    %c0_35 = arith.constant 0 : index
    %73 = vector.load %arg10[%c60, %c0_35] : memref<108x256xf32, #tpu.memory_space<vmem>>, vector<4x256xf32>
    tpu.vector_store %arg10[%c60, %c0_35], %72 {strides = array<i32>} : memref<108x256xf32, #tpu.memory_space<vmem>>, vector<4x256xf32>,
    %c208_i32 = arith.constant 208 : i32
    %74 = tpu.dynamic_rotate %1 by %c208_i32 dim 1 : vector<4x256xf32>, i32 -> vector<4x256xf32>
    %c16_36 = arith.constant 16 : index
    %c0_37 = arith.constant 0 : index
    %75 = vector.load %arg2[%c16_36, %c0_37] : memref<27x256xf32, #tpu.memory_space<vmem>>, vector<1x256xf32>
    %76 = vector.broadcast %75 : vector<1x256xf32> to vector<4x256xf32>
    %77 = arith.mulf %74, %76 : vector<4x256xf32>
    %c64 = arith.constant 64 : index
    %c0_38 = arith.constant 0 : index
    %78 = vector.load %arg10[%c64, %c0_38] : memref<108x256xf32, #tpu.memory_space<vmem>>, vector<4x256xf32>
    tpu.vector_store %arg10[%c64, %c0_38], %77 {strides = array<i32>} : memref<108x256xf32, #tpu.memory_space<vmem>>, vector<4x256xf32>,
    %c205_i32 = arith.constant 205 : i32
    %79 = tpu.dynamic_rotate %1 by %c205_i32 dim 1 : vector<4x256xf32>, i32 -> vector<4x256xf32>
    %c17 = arith.constant 17 : index
    %c0_39 = arith.constant 0 : index
    %80 = vector.load %arg2[%c17, %c0_39] : memref<27x256xf32, #tpu.memory_space<vmem>>, vector<1x256xf32>
    %81 = vector.broadcast %80 : vector<1x256xf32> to vector<4x256xf32>
    %82 = arith.mulf %79, %81 : vector<4x256xf32>
    %c68 = arith.constant 68 : index
    %c0_40 = arith.constant 0 : index
    %83 = vector.load %arg10[%c68, %c0_40] : memref<108x256xf32, #tpu.memory_space<vmem>>, vector<4x256xf32>
    tpu.vector_store %arg10[%c68, %c0_40], %82 {strides = array<i32>} : memref<108x256xf32, #tpu.memory_space<vmem>>, vector<4x256xf32>,
    %c68_i32 = arith.constant 68 : i32
    %84 = tpu.dynamic_rotate %1 by %c68_i32 dim 1 : vector<4x256xf32>, i32 -> vector<4x256xf32>
    %c18 = arith.constant 18 : index
    %c0_41 = arith.constant 0 : index
    %85 = vector.load %arg2[%c18, %c0_41] : memref<27x256xf32, #tpu.memory_space<vmem>>, vector<1x256xf32>
    %86 = vector.broadcast %85 : vector<1x256xf32> to vector<4x256xf32>
    %87 = arith.mulf %84, %86 : vector<4x256xf32>
    %c72 = arith.constant 72 : index
    %c0_42 = arith.constant 0 : index
    %88 = vector.load %arg10[%c72, %c0_42] : memref<108x256xf32, #tpu.memory_space<vmem>>, vector<4x256xf32>
    tpu.vector_store %arg10[%c72, %c0_42], %87 {strides = array<i32>} : memref<108x256xf32, #tpu.memory_space<vmem>>, vector<4x256xf32>,
    %c64_i32 = arith.constant 64 : i32
    %89 = tpu.dynamic_rotate %1 by %c64_i32 dim 1 : vector<4x256xf32>, i32 -> vector<4x256xf32>
    %c19 = arith.constant 19 : index
    %c0_43 = arith.constant 0 : index
    %90 = vector.load %arg2[%c19, %c0_43] : memref<27x256xf32, #tpu.memory_space<vmem>>, vector<1x256xf32>
    %91 = vector.broadcast %90 : vector<1x256xf32> to vector<4x256xf32>
    %92 = arith.mulf %89, %91 : vector<4x256xf32>
    %c76 = arith.constant 76 : index
    %c0_44 = arith.constant 0 : index
    %93 = vector.load %arg10[%c76, %c0_44] : memref<108x256xf32, #tpu.memory_space<vmem>>, vector<4x256xf32>
    tpu.vector_store %arg10[%c76, %c0_44], %92 {strides = array<i32>} : memref<108x256xf32, #tpu.memory_space<vmem>>, vector<4x256xf32>,
    %c60_i32 = arith.constant 60 : i32
    %94 = tpu.dynamic_rotate %1 by %c60_i32 dim 1 : vector<4x256xf32>, i32 -> vector<4x256xf32>
    %c20_45 = arith.constant 20 : index
    %c0_46 = arith.constant 0 : index
    %95 = vector.load %arg2[%c20_45, %c0_46] : memref<27x256xf32, #tpu.memory_space<vmem>>, vector<1x256xf32>
    %96 = vector.broadcast %95 : vector<1x256xf32> to vector<4x256xf32>
    %97 = arith.mulf %94, %96 : vector<4x256xf32>
    %c80 = arith.constant 80 : index
    %c0_47 = arith.constant 0 : index
    %98 = vector.load %arg10[%c80, %c0_47] : memref<108x256xf32, #tpu.memory_space<vmem>>, vector<4x256xf32>
    tpu.vector_store %arg10[%c80, %c0_47], %97 {strides = array<i32>} : memref<108x256xf32, #tpu.memory_space<vmem>>, vector<4x256xf32>,
    %c4_i32 = arith.constant 4 : i32
    %99 = tpu.dynamic_rotate %1 by %c4_i32 dim 1 : vector<4x256xf32>, i32 -> vector<4x256xf32>
    %c21 = arith.constant 21 : index
    %c0_48 = arith.constant 0 : index
    %100 = vector.load %arg2[%c21, %c0_48] : memref<27x256xf32, #tpu.memory_space<vmem>>, vector<1x256xf32>
    %101 = vector.broadcast %100 : vector<1x256xf32> to vector<4x256xf32>
    %102 = arith.mulf %99, %101 : vector<4x256xf32>
    %c84 = arith.constant 84 : index
    %c0_49 = arith.constant 0 : index
    %103 = vector.load %arg10[%c84, %c0_49] : memref<108x256xf32, #tpu.memory_space<vmem>>, vector<4x256xf32>
    tpu.vector_store %arg10[%c84, %c0_49], %102 {strides = array<i32>} : memref<108x256xf32, #tpu.memory_space<vmem>>, vector<4x256xf32>,
    %c88 = arith.constant 88 : index
    %c0_50 = arith.constant 0 : index
    %104 = vector.load %arg10[%c88, %c0_50] : memref<108x256xf32, #tpu.memory_space<vmem>>, vector<4x256xf32>
    tpu.vector_store %arg10[%c88, %c0_50], %1 {strides = array<i32>} : memref<108x256xf32, #tpu.memory_space<vmem>>, vector<4x256xf32>,
    %c252_i32 = arith.constant 252 : i32
    %105 = tpu.dynamic_rotate %1 by %c252_i32 dim 1 : vector<4x256xf32>, i32 -> vector<4x256xf32>
    %c23 = arith.constant 23 : index
    %c0_51 = arith.constant 0 : index
    %106 = vector.load %arg2[%c23, %c0_51] : memref<27x256xf32, #tpu.memory_space<vmem>>, vector<1x256xf32>
    %107 = vector.broadcast %106 : vector<1x256xf32> to vector<4x256xf32>
    %108 = arith.mulf %105, %107 : vector<4x256xf32>
    %c92 = arith.constant 92 : index
    %c0_52 = arith.constant 0 : index
    %109 = vector.load %arg10[%c92, %c0_52] : memref<108x256xf32, #tpu.memory_space<vmem>>, vector<4x256xf32>
    tpu.vector_store %arg10[%c92, %c0_52], %108 {strides = array<i32>} : memref<108x256xf32, #tpu.memory_space<vmem>>, vector<4x256xf32>,
    %c196_i32 = arith.constant 196 : i32
    %110 = tpu.dynamic_rotate %1 by %c196_i32 dim 1 : vector<4x256xf32>, i32 -> vector<4x256xf32>
    %c24_53 = arith.constant 24 : index
    %c0_54 = arith.constant 0 : index
    %111 = vector.load %arg2[%c24_53, %c0_54] : memref<27x256xf32, #tpu.memory_space<vmem>>, vector<1x256xf32>
    %112 = vector.broadcast %111 : vector<1x256xf32> to vector<4x256xf32>
    %113 = arith.mulf %110, %112 : vector<4x256xf32>
    %c96 = arith.constant 96 : index
    %c0_55 = arith.constant 0 : index
    %114 = vector.load %arg10[%c96, %c0_55] : memref<108x256xf32, #tpu.memory_space<vmem>>, vector<4x256xf32>
    tpu.vector_store %arg10[%c96, %c0_55], %113 {strides = array<i32>} : memref<108x256xf32, #tpu.memory_space<vmem>>, vector<4x256xf32>,
    %c192_i32 = arith.constant 192 : i32
    %115 = tpu.dynamic_rotate %1 by %c192_i32 dim 1 : vector<4x256xf32>, i32 -> vector<4x256xf32>
    %c25 = arith.constant 25 : index
    %c0_56 = arith.constant 0 : index
    %116 = vector.load %arg2[%c25, %c0_56] : memref<27x256xf32, #tpu.memory_space<vmem>>, vector<1x256xf32>
    %117 = vector.broadcast %116 : vector<1x256xf32> to vector<4x256xf32>
    %118 = arith.mulf %115, %117 : vector<4x256xf32>
    %c100 = arith.constant 100 : index
    %c0_57 = arith.constant 0 : index
    %119 = vector.load %arg10[%c100, %c0_57] : memref<108x256xf32, #tpu.memory_space<vmem>>, vector<4x256xf32>
    tpu.vector_store %arg10[%c100, %c0_57], %118 {strides = array<i32>} : memref<108x256xf32, #tpu.memory_space<vmem>>, vector<4x256xf32>,
    %c188_i32 = arith.constant 188 : i32
    %120 = tpu.dynamic_rotate %1 by %c188_i32 dim 1 : vector<4x256xf32>, i32 -> vector<4x256xf32>
    %c26 = arith.constant 26 : index
    %c0_58 = arith.constant 0 : index
    %121 = vector.load %arg2[%c26, %c0_58] : memref<27x256xf32, #tpu.memory_space<vmem>>, vector<1x256xf32>
    %122 = vector.broadcast %121 : vector<1x256xf32> to vector<4x256xf32>
    %123 = arith.mulf %120, %122 : vector<4x256xf32>
    %c104 = arith.constant 104 : index
    %c0_59 = arith.constant 0 : index
    %124 = vector.load %arg10[%c104, %c0_59] : memref<108x256xf32, #tpu.memory_space<vmem>>, vector<4x256xf32>
    tpu.vector_store %arg10[%c104, %c0_59], %123 {strides = array<i32>} : memref<108x256xf32, #tpu.memory_space<vmem>>, vector<4x256xf32>,
    %c0_60 = arith.constant 0 : index
    %c0_61 = arith.constant 0 : index
    %125 = vector.load %arg3[%c0_60, %c0_61] : memref<18x108xbf16, #tpu.memory_space<vmem>>, vector<18x108xbf16>
    %c0_62 = arith.constant 0 : index
    %c0_63 = arith.constant 0 : index
    %126 = vector.load %arg10[%c0_62, %c0_63] : memref<108x256xf32, #tpu.memory_space<vmem>>, vector<108x256xf32>
    %127 = arith.truncf %126 : vector<108x256xf32> to vector<108x256xbf16>
    %cst = arith.constant dense<0.000000e+00> : vector<18x256xf32>
    %128 = tpu.matmul %125, %127, %cst {dimension_numbers = #tpu.dot_dimension_numbers<[1], [0], [0], [1], [0, 0, 1, 1], [], []>} : vector<18x108xbf16>, vector<108x256xbf16>, vector<18x256xf32> -> vector<18x256xf32>
    %c0_64 = arith.constant 0 : index
    %c0_65 = arith.constant 0 : index
    %129 = vector.load %arg4[%c0_64, %c0_65] : memref<18x1xf32, #tpu.memory_space<vmem>>, vector<18x1xf32>
    %130 = vector.broadcast %129 : vector<18x1xf32> to vector<18x256xf32>
    %131 = arith.addf %128, %130 : vector<18x256xf32>
    %c255_i32 = arith.constant 255 : i32
    %132 = tpu.dynamic_rotate %131 by %c255_i32 dim 1 : vector<18x256xf32>, i32 -> vector<18x256xf32>
    %133 = arith.maximumf %131, %132 : vector<18x256xf32>
    %134 = arith.truncf %133 : vector<18x256xf32> to vector<18x256xbf16>
    %c0_66 = arith.constant 0 : index
    %c0_67 = arith.constant 0 : index
    %135 = vector.load %arg7[%c0_66, %c0_67] : memref<256x16xbf16, #tpu.memory_space<vmem>>, vector<256x16xbf16>
    %cst_68 = arith.constant dense<0.000000e+00> : vector<18x16xf32>
    %136 = tpu.matmul %134, %135, %cst_68 {dimension_numbers = #tpu.dot_dimension_numbers<[1], [0], [0], [1], [0, 0, 1, 1], [], []>} : vector<18x256xbf16>, vector<256x16xbf16>, vector<18x16xf32> -> vector<18x16xf32>
    %c0_69 = arith.constant 0 : index
    %c0_70 = arith.constant 0 : index
    %137 = vector.load %arg5[%c0_69, %c0_70] : memref<19x18xbf16, #tpu.memory_space<vmem>>, vector<19x18xbf16>
    %138 = arith.truncf %136 : vector<18x16xf32> to vector<18x16xbf16>
    %cst_71 = arith.constant dense<0.000000e+00> : vector<19x16xf32>
    %139 = tpu.matmul %137, %138, %cst_71 {dimension_numbers = #tpu.dot_dimension_numbers<[1], [0], [0], [1], [0, 0, 1, 1], [], []>} : vector<19x18xbf16>, vector<18x16xbf16>, vector<19x16xf32> -> vector<19x16xf32>
    %c0_72 = arith.constant 0 : index
    %c0_73 = arith.constant 0 : index
    %140 = vector.load %arg6[%c0_72, %c0_73] : memref<19x1xf32, #tpu.memory_space<vmem>>, vector<19x1xf32>
    %141 = vector.broadcast %140 : vector<19x1xf32> to vector<19x16xf32>
    %142 = arith.addf %139, %141 : vector<19x16xf32>
    %143 = arith.truncf %142 : vector<19x16xf32> to vector<19x16xbf16>
    %c0_74 = arith.constant 0 : index
    %c0_75 = arith.constant 0 : index
    %144 = vector.load %arg8[%c0_74, %c0_75] : memref<16x256xbf16, #tpu.memory_space<vmem>>, vector<16x256xbf16>
    %cst_76 = arith.constant dense<0.000000e+00> : vector<19x256xf32>
    %145 = tpu.matmul %143, %144, %cst_76 {dimension_numbers = #tpu.dot_dimension_numbers<[1], [0], [0], [1], [0, 0, 1, 1], [], []>} : vector<19x16xbf16>, vector<16x256xbf16>, vector<19x256xf32> -> vector<19x256xf32>
    %146 = vector.extract_strided_slice %145 {offsets = [18, 0], sizes = [1, 256], strides = [1, 1]} : vector<19x256xf32> to vector<1x256xf32>
    %cst_77 = arith.constant 0.000000e+00 : f32
    %147 = vector.broadcast %cst_77 : f32 to vector<1x256xf32>
    %148 = arith.subf %147, %146 : vector<1x256xf32>
    %149 = math.exp %148 : vector<1x256xf32>
    %cst_78 = arith.constant 1.000000e+00 : f32
    %150 = vector.broadcast %cst_78 : f32 to vector<1x256xf32>
    %151 = arith.addf %150, %149 : vector<1x256xf32>
    %152 = tpu.reciprocal %151 {approx = true} : vector<1x256xf32> -> vector<1x256xf32>
    %153 = vector.extract_strided_slice %145 {offsets = [0, 0], sizes = [18, 256], strides = [1, 1]} : vector<19x256xf32> to vector<18x256xf32>
    %154 = tpu.concatenate %153, %133, %152 in 0 : vector<18x256xf32>, vector<18x256xf32>, vector<1x256xf32> -> vector<37x256xf32>
    %c0_79 = arith.constant 0 : index
    %c0_80 = arith.constant 0 : index
    %c0_81 = arith.constant 0 : index
    %155 = vector.load %arg9[%c0_79, %c0_80, %c0_81] : memref<1x37x256xf32, #tpu.memory_space<vmem>>, vector<1x37x256xf32>
    %156 = vector.shape_cast %155 : vector<1x37x256xf32> to vector<37x256xf32>
    %157 = vector.shape_cast %154 : vector<37x256xf32> to vector<1x37x256xf32>
    tpu.vector_store %arg9[%c0_79, %c0_80, %c0_81], %157 {strides = array<i32>} : memref<1x37x256xf32, #tpu.memory_space<vmem>>, vector<1x37x256xf32>,
    return
  }
  func.func @transform_0(%arg0: i32) -> (i32, i32, i32) {
    %c0_i32 = arith.constant 0 : i32
    %c0_i32_0 = arith.constant 0 : i32
    %c0_i32_1 = arith.constant 0 : i32
    return %arg0, %c0_i32, %c0_i32_0 : i32, i32, i32
  }
  func.func @transform_1(%arg0: i32) -> (i32, i32) {
    %c0_i32 = arith.constant 0 : i32
    %c0_i32_0 = arith.constant 0 : i32
    %c0_i32_1 = arith.constant 0 : i32
    return %c0_i32, %c0_i32_0 : i32, i32
  }
  func.func @transform_2(%arg0: i32) -> (i32, i32) {
    %c0_i32 = arith.constant 0 : i32
    %c0_i32_0 = arith.constant 0 : i32
    %c0_i32_1 = arith.constant 0 : i32
    return %c0_i32, %c0_i32_0 : i32, i32
  }
  func.func @transform_3(%arg0: i32) -> (i32, i32) {
    %c0_i32 = arith.constant 0 : i32
    %c0_i32_0 = arith.constant 0 : i32
    %c0_i32_1 = arith.constant 0 : i32
    return %c0_i32, %c0_i32_0 : i32, i32
  }
  func.func @transform_4(%arg0: i32) -> (i32, i32) {
    %c0_i32 = arith.constant 0 : i32
    %c0_i32_0 = arith.constant 0 : i32
    %c0_i32_1 = arith.constant 0 : i32
    return %c0_i32, %c0_i32_0 : i32, i32
  }
  func.func @transform_5(%arg0: i32) -> (i32, i32) {
    %c0_i32 = arith.constant 0 : i32
    %c0_i32_0 = arith.constant 0 : i32
    %c0_i32_1 = arith.constant 0 : i32
    return %c0_i32, %c0_i32_0 : i32, i32
  }
  func.func @transform_6(%arg0: i32) -> (i32, i32) {
    %c0_i32 = arith.constant 0 : i32
    %c0_i32_0 = arith.constant 0 : i32
    %c0_i32_1 = arith.constant 0 : i32
    return %c0_i32, %c0_i32_0 : i32, i32
  }
  func.func @transform_7(%arg0: i32) -> (i32, i32) {
    %c0_i32 = arith.constant 0 : i32
    %c0_i32_0 = arith.constant 0 : i32
    %c0_i32_1 = arith.constant 0 : i32
    return %c0_i32, %c0_i32_0 : i32, i32
  }
  func.func @transform_8(%arg0: i32) -> (i32, i32, i32) {
    %c0_i32 = arith.constant 0 : i32
    %c0_i32_0 = arith.constant 0 : i32
    %c0_i32_1 = arith.constant 0 : i32
    return %arg0, %c0_i32, %c0_i32_0 : i32, i32, i32
  }
}

</mosaic_0001>

<llo_original>
// kernel: block_forward.1
$region0: #{block_forward.1}
  #allocation0 [shape = 'u32[]', space=smem, size = 0x4, offset = 0x4, fixed_abs, tag = 'smem constant byte address 0x4 - core index']
  #allocation1 [shape = 'u32[144,128]{1,0:T(1,128)}', space=vmem, size = 0x12000, scoped, tag = 'internal scratch']
  #allocation2 [shape = 'f32[108,256]{1,0:T(8,128)}', space=vmem, size = 0x1c000, scoped, tag = 'scratch operand']
  %s0 = inlined_call_operand.vmem [shape: f32[2,4,256], index: 0, kind: input, shape index: {}]
  %s1 = inlined_call_operand.vmem [shape: f32[27,256], index: 1, kind: input, shape index: {}]
  %s2 = inlined_call_operand.vmem [shape: bf16[18,108], index: 2, kind: input, shape index: {}]
  %s3 = inlined_call_operand.vmem [shape: f32[18,1], index: 3, kind: input, shape index: {}]
  %s4 = inlined_call_operand.vmem [shape: bf16[19,18], index: 4, kind: input, shape index: {}]
  %s5 = inlined_call_operand.vmem [shape: f32[19,1], index: 5, kind: input, shape index: {}]
  %s6 = inlined_call_operand.vmem [shape: bf16[256,16], index: 6, kind: input, shape index: {}]
  %s7 = inlined_call_operand.vmem [shape: bf16[16,256], index: 7, kind: input, shape index: {}]
  %s8 = inlined_call_operand.vmem [shape: f32[2,37,256], index: 8, kind: output, shape index: {}]
  %s9 = sld [smem:[#allocation0]]
  $region65: #{block_forward.1} parent=0
    _
  %s11 = ssub.s32 1, %s9
  %s12 = scalar_select 0, %s11, %s9
  loop: start=0, step=1, limit=4
  $region2: #{block_forward.1} parent=0 // loop_pre_header
    _
  $region3: #{block_forward.1} parent=0 // loop_header
    %s14 = sphi 0, %s18
    %p15 = scmp.ge.s32.totalorder %s14, 4
    %s24 = sphi 0, %s26
    %s27 = sphi 0, %s24
    %s28 = sphi 0, %s27
    %s44 = sphi 0, %s28
    %s48 = sphi 0, %s48
    %s50 = sphi 0, %s48
    %s51 = sphi 0, %s50
    %s65 = sphi 0, %s51
    %s69 = sphi 0, %s69
    %s71 = sphi 0, %s69
    %s72 = sphi 0, %s71
    %s86 = sphi 0, %s72
    %s90 = sphi 0, %s90
    %s92 = sphi 0, %s90
    %s93 = sphi 0, %s92
    %s107 = sphi 0, %s93
    %s111 = sphi 0, %s111
    %s113 = sphi 0, %s111
    %s114 = sphi 0, %s113
    %s128 = sphi 0, %s114
    %s132 = sphi 0, %s132
    %s134 = sphi 0, %s132
    %s135 = sphi 0, %s134
    %s149 = sphi 0, %s135
    %s153 = sphi 0, %s153
    %s155 = sphi 0, %s153
    %s156 = sphi 0, %s155
    %s170 = sphi 0, %s156
    %s174 = sphi 0, %s174
    %s176 = sphi 0, %s174
    %s177 = sphi 0, %s176
    %s191 = sphi 0, %s177
    %s197 = sphi 0, %s199
    %s200 = sphi 0, %s197
    %s201 = sphi 0, %s200
    %s217 = sphi 0, %s201
  $region4: #{block_forward.1} parent=0 // loop_header_branch
    %17 = sbr.rel (%p15) target = $region8
  $region5: #{block_forward.1} parent=0 // loop_body
    %s19 = ssub.s32 %s14, 1
    %s20 = ssub.s32 %s14, 2
    %s21 = sadd.s32 %s14, 1
    %s22 = ssub.s32 %s14, %s21
    %p23 = scmp.eq.s32.totalorder %s22, 0
    %s25 = sadd.s32 %s24, 1
    %s26 = scalar_select %p23, %s24, %s25
    %p29 = pneg %p23
    %p30 = scmp.eq.s32.totalorder %s14, 1
    %p31 = por %p29, %p30
    %p32 = scmp.ne.s32.totalorder %s24, %s27
    %p33 = scmp.eq.s32.totalorder %s14, 0
    %p34 = por %p32, %p33
    %p35 = scmp.ne.s32.totalorder %s24, %s27
    %p36 = scmp.eq.s32.totalorder %s19, 1
    %p37 = por %p35, %p36
    %p38 = scmp.ne.s32.totalorder %s27, %s28
    %p39 = scmp.eq.s32.totalorder %s19, 0
    %p40 = por %p38, %p39
    %p41 = scmp.ne.s32.totalorder %s27, %s28
    %p42 = scmp.eq.s32.totalorder %s20, 1
    %p43 = por %p41, %p42
    %p45 = scmp.ne.s32.totalorder %s28, %s44
    %p46 = scmp.eq.s32.totalorder %s20, 0
    %p47 = por %p45, %p46
    %s49 = sadd.s32 %s48, 1
    %p52 = scmp.eq.s32.totalorder %s14, 1
    %p53 = scmp.ne.s32.totalorder %s48, %s50
    %p54 = scmp.eq.s32.totalorder %s14, 0
    %p55 = por %p53, %p54
    %p56 = scmp.ne.s32.totalorder %s48, %s50
    %p57 = scmp.eq.s32.totalorder %s19, 1
    %p58 = por %p56, %p57
    %p59 = scmp.ne.s32.totalorder %s50, %s51
    %p60 = scmp.eq.s32.totalorder %s19, 0
    %p61 = por %p59, %p60
    %p62 = scmp.ne.s32.totalorder %s50, %s51
    %p63 = scmp.eq.s32.totalorder %s20, 1
    %p64 = por %p62, %p63
    %p66 = scmp.ne.s32.totalorder %s51, %s65
    %p67 = scmp.eq.s32.totalorder %s20, 0
    %p68 = por %p66, %p67
    %s70 = sadd.s32 %s69, 1
    %p73 = scmp.eq.s32.totalorder %s14, 1
    %p74 = scmp.ne.s32.totalorder %s69, %s71
    %p75 = scmp.eq.s32.totalorder %s14, 0
    %p76 = por %p74, %p75
    %p77 = scmp.ne.s32.totalorder %s69, %s71
    %p78 = scmp.eq.s32.totalorder %s19, 1
    %p79 = por %p77, %p78
    %p80 = scmp.ne.s32.totalorder %s71, %s72
    %p81 = scmp.eq.s32.totalorder %s19, 0
    %p82 = por %p80, %p81
    %p83 = scmp.ne.s32.totalorder %s71, %s72
    %p84 = scmp.eq.s32.totalorder %s20, 1
    %p85 = por %p83, %p84
    %p87 = scmp.ne.s32.totalorder %s72, %s86
    %p88 = scmp.eq.s32.totalorder %s20, 0
    %p89 = por %p87, %p88
    %s91 = sadd.s32 %s90, 1
    %p94 = scmp.eq.s32.totalorder %s14, 1
    %p95 = scmp.ne.s32.totalorder %s90, %s92
    %p96 = scmp.eq.s32.totalorder %s14, 0
    %p97 = por %p95, %p96
    %p98 = scmp.ne.s32.totalorder %s90, %s92
    %p99 = scmp.eq.s32.totalorder %s19, 1
    %p100 = por %p98, %p99
    %p101 = scmp.ne.s32.totalorder %s92, %s93
    %p102 = scmp.eq.s32.totalorder %s19, 0
    %p103 = por %p101, %p102
    %p104 = scmp.ne.s32.totalorder %s92, %s93
    %p105 = scmp.eq.s32.totalorder %s20, 1
    %p106 = por %p104, %p105
    %p108 = scmp.ne.s32.totalorder %s93, %s107
    %p109 = scmp.eq.s32.totalorder %s20, 0
    %p110 = por %p108, %p109
    %s112 = sadd.s32 %s111, 1
    %p115 = scmp.eq.s32.totalorder %s14, 1
    %p116 = scmp.ne.s32.totalorder %s111, %s113
    %p117 = scmp.eq.s32.totalorder %s14, 0
    %p118 = por %p116, %p117
    %p119 = scmp.ne.s32.totalorder %s111, %s113
    %p120 = scmp.eq.s32.totalorder %s19, 1
    %p121 = por %p119, %p120
    %p122 = scmp.ne.s32.totalorder %s113, %s114
    %p123 = scmp.eq.s32.totalorder %s19, 0
    %p124 = por %p122, %p123
    %p125 = scmp.ne.s32.totalorder %s113, %s114
    %p126 = scmp.eq.s32.totalorder %s20, 1
    %p127 = por %p125, %p126
    %p129 = scmp.ne.s32.totalorder %s114, %s128
    %p130 = scmp.eq.s32.totalorder %s20, 0
    %p131 = por %p129, %p130
    %s133 = sadd.s32 %s132, 1
    %p136 = scmp.eq.s32.totalorder %s14, 1
    %p137 = scmp.ne.s32.totalorder %s132, %s134
    %p138 = scmp.eq.s32.totalorder %s14, 0
    %p139 = por %p137, %p138
    %p140 = scmp.ne.s32.totalorder %s132, %s134
    %p141 = scmp.eq.s32.totalorder %s19, 1
    %p142 = por %p140, %p141
    %p143 = scmp.ne.s32.totalorder %s134, %s135
    %p144 = scmp.eq.s32.totalorder %s19, 0
    %p145 = por %p143, %p144
    %p146 = scmp.ne.s32.totalorder %s134, %s135
    %p147 = scmp.eq.s32.totalorder %s20, 1
    %p148 = por %p146, %p147
    %p150 = scmp.ne.s32.totalorder %s135, %s149
    %p151 = scmp.eq.s32.totalorder %s20, 0
    %p152 = por %p150, %p151
    %s154 = sadd.s32 %s153, 1
    %p157 = scmp.eq.s32.totalorder %s14, 1
    %p158 = scmp.ne.s32.totalorder %s153, %s155
    %p159 = scmp.eq.s32.totalorder %s14, 0
    %p160 = por %p158, %p159
    %p161 = scmp.ne.s32.totalorder %s153, %s155
    %p162 = scmp.eq.s32.totalorder %s19, 1
    %p163 = por %p161, %p162
    %p164 = scmp.ne.s32.totalorder %s155, %s156
    %p165 = scmp.eq.s32.totalorder %s19, 0
    %p166 = por %p164, %p165
    %p167 = scmp.ne.s32.totalorder %s155, %s156
    %p168 = scmp.eq.s32.totalorder %s20, 1
    %p169 = por %p167, %p168
    %p171 = scmp.ne.s32.totalorder %s156, %s170
    %p172 = scmp.eq.s32.totalorder %s20, 0
    %p173 = por %p171, %p172
    %s175 = sadd.s32 %s174, 1
    %p178 = scmp.eq.s32.totalorder %s14, 1
    %p179 = scmp.ne.s32.totalorder %s174, %s176
    %p180 = scmp.eq.s32.totalorder %s14, 0
    %p181 = por %p179, %p180
    %p182 = scmp.ne.s32.totalorder %s174, %s176
    %p183 = scmp.eq.s32.totalorder %s19, 1
    %p184 = por %p182, %p183
    %p185 = scmp.ne.s32.totalorder %s176, %s177
    %p186 = scmp.eq.s32.totalorder %s19, 0
    %p187 = por %p185, %p186
    %p188 = scmp.ne.s32.totalorder %s176, %s177
    %p189 = scmp.eq.s32.totalorder %s20, 1
    %p190 = por %p188, %p189
    %p192 = scmp.ne.s32.totalorder %s177, %s191
    %p193 = scmp.eq.s32.totalorder %s20, 0
    %p194 = por %p192, %p193
    %s195 = ssub.s32 %s14, %s21
    %p196 = scmp.eq.s32.totalorder %s195, 0
    %s198 = sadd.s32 %s197, 1
    %s199 = scalar_select %p196, %s197, %s198
    %p202 = pneg %p196
    %p203 = scmp.eq.s32.totalorder %s14, 1
    %p204 = por %p202, %p203
    %p205 = scmp.ne.s32.totalorder %s197, %s200
    %p206 = scmp.eq.s32.totalorder %s14, 0
    %p207 = por %p205, %p206
    %p208 = scmp.ne.s32.totalorder %s197, %s200
    %p209 = scmp.eq.s32.totalorder %s19, 1
    %p210 = por %p208, %p209
    %p211 = scmp.ne.s32.totalorder %s200, %s201
    %p212 = scmp.eq.s32.totalorder %s19, 0
    %p213 = por %p211, %p212
    %p214 = scmp.ne.s32.totalorder %s200, %s201
    %p215 = scmp.eq.s32.totalorder %s20, 1
    %p216 = por %p214, %p215
    %p218 = scmp.ne.s32.totalorder %s201, %s217
    %p219 = scmp.eq.s32.totalorder %s20, 0
    %p220 = por %p218, %p219
    %p221 = scmp.le.s32.totalorder 1, %s14
    %p222 = scmp.lt.s32.totalorder %s14, 3
    %p223 = pnand %p221, %p222
    %p224 = pneg %p223
    // Predicated region
    $region9: #{block_forward.1} parent=5 // pred_check
      _
    $region10: #{block_forward.1} parent=5 // pred_check_branch
      %226 = sbr.rel (%p223) target = $region12
    $region11: #{block_forward.1} parent=5 // pred_region
      %s227 = ssub.s32 %s14, 1
      // Predicated region
      $region13: #{block_forward.1} parent=11 // pred_check
        %p228 = pneg %p61
      $region14: #{block_forward.1} parent=11 // pred_check_branch
        %230 = sbr.rel (%p228) target = $region16
      $region15: #{block_forward.1} parent=11 // pred_region
        _
      $region16: #{block_forward.1} parent=11 // pred_fallthru
        _
      // Predicated region
      $region17: #{block_forward.1} parent=11 // pred_check
        %p231 = pneg %p82
      $region18: #{block_forward.1} parent=11 // pred_check_branch
        %233 = sbr.rel (%p231) target = $region20
      $region19: #{block_forward.1} parent=11 // pred_region
        _
      $region20: #{block_forward.1} parent=11 // pred_fallthru
        _
      // Predicated region
      $region21: #{block_forward.1} parent=11 // pred_check
        %p234 = pneg %p103
      $region22: #{block_forward.1} parent=11 // pred_check_branch
        %236 = sbr.rel (%p234) target = $region24
      $region23: #{block_forward.1} parent=11 // pred_region
        _
      $region24: #{block_forward.1} parent=11 // pred_fallthru
        _
      // Predicated region
      $region25: #{block_forward.1} parent=11 // pred_check
        %p237 = pneg %p124
      $region26: #{block_forward.1} parent=11 // pred_check_branch
        %239 = sbr.rel (%p237) target = $region28
      $region27: #{block_forward.1} parent=11 // pred_region
        _
      $region28: #{block_forward.1} parent=11 // pred_fallthru
        _
      // Predicated region
      $region29: #{block_forward.1} parent=11 // pred_check
        %p240 = pneg %p145
      $region30: #{block_forward.1} parent=11 // pred_check_branch
        %242 = sbr.rel (%p240) target = $region32
      $region31: #{block_forward.1} parent=11 // pred_region
        _
      $region32: #{block_forward.1} parent=11 // pred_fallthru
        _
      // Predicated region
      $region33: #{block_forward.1} parent=11 // pred_check
        %p243 = pneg %p166
      $region34: #{block_forward.1} parent=11 // pred_check_branch
        %245 = sbr.rel (%p243) target = $region36
      $region35: #{block_forward.1} parent=11 // pred_region
        _
      $region36: #{block_forward.1} parent=11 // pred_fallthru
        _
      // Predicated region
      $region37: #{block_forward.1} parent=11 // pred_check
        %p246 = pneg %p187
      $region38: #{block_forward.1} parent=11 // pred_check_branch
        %248 = sbr.rel (%p246) target = $region40
      $region39: #{block_forward.1} parent=11 // pred_region
        _
      $region40: #{block_forward.1} parent=11 // pred_fallthru
        _
    $region12: #{block_forward.1} parent=5 // pred_fallthru
      _
    %p249 = scmp.lt.s32.totalorder %s14, 2
    // Predicated region
    $region41: #{block_forward.1} parent=5 // pred_check
      %p250 = pneg %p249
    $region42: #{block_forward.1} parent=5 // pred_check_branch
      %252 = sbr.rel (%p250) target = $region44
    $region43: #{block_forward.1} parent=5 // pred_region
      // Predicated region
      $region45: #{block_forward.1} parent=43 // pred_check
        %p253 = pneg %p34
      $region46: #{block_forward.1} parent=43 // pred_check_branch
        %255 = sbr.rel (%p253) target = $region48
      $region47: #{block_forward.1} parent=43 // pred_region
        %p256 = scmp.lt.s32.totalorder %s14, 1
        %s257 = scalar_select %p256, %s14, 1
        %s258 = smul.addr %s257, 2
        %s259 = smul.addr %s258, 4
        %s260 = scalar_lea.vmem %s0, %s259
      $region48: #{block_forward.1} parent=43 // pred_fallthru
        _
    $region44: #{block_forward.1} parent=5 // pred_fallthru
      _
    %p261 = scmp.le.s32.totalorder 1, %s14
    %p262 = scmp.lt.s32.totalorder %s14, 3
    %p263 = pnand %p261, %p262
    %p264 = pneg %p263
    // Predicated region
    $region49: #{block_forward.1} parent=5 // pred_check
      _
    $region50: #{block_forward.1} parent=5 // pred_check_branch
      %266 = sbr.rel (%p263) target = $region52
    $region51: #{block_forward.1} parent=5 // pred_region
      %s267 = ssub.s32 %s14, 1
      %p268 = scmp.lt.s32.totalorder %s19, 1
      %s269 = scalar_select %p268, %s19, 1
      %s270 = smul.addr %s269, 2
      %s271 = smul.addr %s270, 4
      %s272 = scalar_lea.vmem %s0, %s271
      %p273 = pneg %p40
      %p274 = pneg %p37
      %p275 = pneg %p61
      %p276 = pneg %p58
      %p277 = pneg %p82
      %p278 = pneg %p79
      %p279 = pneg %p103
      %p280 = pneg %p100
      %p281 = pneg %p124
      %p282 = pneg %p121
      %p283 = pneg %p145
      %p284 = pneg %p142
      %p285 = pneg %p166
      %p286 = pneg %p163
      %p287 = pneg %p187
      %p288 = pneg %p184
      %p289 = pneg %p213
      %p290 = pneg %p210
      %p291 = scmp.lt.s32.totalorder %s19, 1
      %s292 = scalar_select %p291, %s19, 1
      %s293 = smul.addr %s292, 10
      %s294 = smul.addr %s293, 8
      %s295 = scalar_lea.vmem %s8, %s294
      %p296 = scmp.lt.s32.totalorder %s19, 1
      %s297 = scalar_select %p296, %s19, 1
      %s298 = smul.addr %s297, 2
      %s299 = smul.addr %s298, 4
      %s300 = scalar_lea.vmem %s0, %s299
      %p301 = scmp.lt.s32.totalorder %s19, 1
      %s302 = scalar_select %p301, %s19, 1
      %s303 = smul.addr %s302, 10
      %s304 = smul.addr %s303, 8
      %s305 = scalar_lea.vmem %s8, %s304
      %v307 = vld [vmem:[%s300] sm:$0xff]
      %v309 = vcombine.high %v307, %v307
      %311 = vrot.lane.b32.xlu0 %v307, 34
      %v312 = vpop.permute.xlu0 %311
      %313 = vrot.lane.b32.xlu0 %v309, 34
      %v314 = vpop.permute.xlu0 %313
      %v315 = vlaneseq
      %v316 = vand.u32 %v315, 127
      %vm317 = vcmp.lt.s32.totalorder %v316, 34
      %v318 = vsel %vm317, %v312, %v314
      %v319 = vsel %vm317, %v314, %v312
      %v320 = vld [vmem:[%s1] ss:$8 sm:$0x3]
      %v322 = vlaneseq
      %v323 = vshrl.u32 %v322, 7
      %v324 = vsub.s32 0, %v323
      %v325 = vrot.slane %v320, %v324
      %v326 = vlaneseq
      %v327 = vshrl.u32 %v326, 7
      %v328 = vsub.s32 1, %v327
      %v329 = vrot.slane %v320, %v328
      %v332 = vmul.f32 %v319, %v325
      %v333 = vmul.f32 %v318, %v329
      %334 = vst [vmem:[#allocation2] sm:$0xf] %v332
      %335 = vst [vmem:[#allocation2 + $0x8] sm:$0xf] %v333
      %336 = vrot.lane.b32.xlu0 %v307, 32
      %v337 = vpop.permute.xlu0 %336
      %338 = vrot.lane.b32.xlu0 %v309, 32
      %v339 = vpop.permute.xlu0 %338
      %vm340 = vcmp.lt.s32.totalorder %v316, 32
      %v341 = vsel %vm340, %v337, %v339
      %v342 = vsel %vm340, %v339, %v337
      %s343 = scalar_lea.vmem %s1, 1
      %v344 = vld [vmem:[%s343] ss:$8 sm:$0x3]
      %v346 = vlaneseq
      %v347 = vshrl.u32 %v346, 7
      %v348 = vsub.s32 0, %v347
      %v349 = vrot.slane %v344, %v348
      %v350 = vlaneseq
      %v351 = vshrl.u32 %v350, 7
      %v352 = vsub.s32 1, %v351
      %v353 = vrot.slane %v344, %v352
      %v356 = vmul.f32 %v342, %v349
      %v357 = vmul.f32 %v341, %v353
      %v360 = vrot.slane %v356, 4
      %v361 = vrot.slane %v357, 4
      %364 = vst [vmem:[#allocation2] sm:$0xf0] %v360
      %365 = vst [vmem:[#allocation2 + $0x8] sm:$0xf0] %v361
      %366 = vrot.lane.b32.xlu0 %v307, 30
      %v367 = vpop.permute.xlu0 %366
      %368 = vrot.lane.b32.xlu0 %v309, 30
      %v369 = vpop.permute.xlu0 %368
      %vm370 = vcmp.lt.s32.totalorder %v316, 30
      %v371 = vsel %vm370, %v367, %v369
      %v372 = vsel %vm370, %v369, %v367
      %s373 = scalar_lea.vmem %s1, 2
      %v374 = vld [vmem:[%s373] ss:$8 sm:$0x3]
      %v376 = vlaneseq
      %v377 = vshrl.u32 %v376, 7
      %v378 = vsub.s32 0, %v377
      %v379 = vrot.slane %v374, %v378
      %v380 = vlaneseq
      %v381 = vshrl.u32 %v380, 7
      %v382 = vsub.s32 1, %v381
      %v383 = vrot.slane %v374, %v382
      %v386 = vmul.f32 %v372, %v379
      %v387 = vmul.f32 %v371, %v383
      %388 = vst [vmem:[#allocation2 + $0x10] sm:$0xf] %v386
      %389 = vst [vmem:[#allocation2 + $0x18] sm:$0xf] %v387
      %390 = vrot.lane.b32.xlu0 %v307, 2
      %v391 = vpop.permute.xlu0 %390
      %392 = vrot.lane.b32.xlu0 %v309, 2
      %v393 = vpop.permute.xlu0 %392
      %vm394 = vcmp.lt.s32.totalorder %v316, 2
      %v395 = vsel %vm394, %v391, %v393
      %v396 = vsel %vm394, %v393, %v391
      %s397 = scalar_lea.vmem %s1, 3
      %v398 = vld [vmem:[%s397] ss:$8 sm:$0x3]
      %v400 = vlaneseq
      %v401 = vshrl.u32 %v400, 7
      %v402 = vsub.s32 0, %v401
      %v403 = vrot.slane %v398, %v402
      %v404 = vlaneseq
      %v405 = vshrl.u32 %v404, 7
      %v406 = vsub.s32 1, %v405
      %v407 = vrot.slane %v398, %v406
      %v410 = vmul.f32 %v396, %v403
      %v411 = vmul.f32 %v395, %v407
      %v414 = vrot.slane %v410, 4
      %v415 = vrot.slane %v411, 4
      %418 = vst [vmem:[#allocation2 + $0x10] sm:$0xf0] %v414
      %419 = vst [vmem:[#allocation2 + $0x18] sm:$0xf0] %v415
      %420 = vst [vmem:[#allocation2 + $0x20] sm:$0xf] %v307
      %421 = vst [vmem:[#allocation2 + $0x28] sm:$0xf] %v309
      %422 = vrot.lane.b32.xlu0 %v307, 126
      %v423 = vpop.permute.xlu0 %422
      %424 = vrot.lane.b32.xlu0 %v309, 126
      %v425 = vpop.permute.xlu0 %424
      %vm426 = vcmp.lt.s32.totalorder %v316, 126
      %v427 = vsel %vm426, %v423, %v425
      %v428 = vsel %vm426, %v425, %v423
      %s429 = scalar_lea.vmem %s1, 5
      %v430 = vld [vmem:[%s429] ss:$8 sm:$0x3]
      %v432 = vlaneseq
      %v433 = vshrl.u32 %v432, 7
      %v434 = vsub.s32 0, %v433
      %v435 = vrot.slane %v430, %v434
      %v436 = vlaneseq
      %v437 = vshrl.u32 %v436, 7
      %v438 = vsub.s32 1, %v437
      %v439 = vrot.slane %v430, %v438
      %v442 = vmul.f32 %v427, %v435
      %v443 = vmul.f32 %v428, %v439
      %v446 = vrot.slane %v442, 4
      %v447 = vrot.slane %v443, 4
      %450 = vst [vmem:[#allocation2 + $0x20] sm:$0xf0] %v446
      %451 = vst [vmem:[#allocation2 + $0x28] sm:$0xf0] %v447
      %452 = vrot.lane.b32.xlu0 %v307, 98
      %v453 = vpop.permute.xlu0 %452
      %454 = vrot.lane.b32.xlu0 %v309, 98
      %v455 = vpop.permute.xlu0 %454
      %vm456 = vcmp.lt.s32.totalorder %v316, 98
      %v457 = vsel %vm456, %v453, %v455
      %v458 = vsel %vm456, %v455, %v453
      %s459 = scalar_lea.vmem %s1, 6
      %v460 = vld [vmem:[%s459] ss:$8 sm:$0x3]
      %v462 = vlaneseq
      %v463 = vshrl.u32 %v462, 7
      %v464 = vsub.s32 0, %v463
      %v465 = vrot.slane %v460, %v464
      %v466 = vlaneseq
      %v467 = vshrl.u32 %v466, 7
      %v468 = vsub.s32 1, %v467
      %v469 = vrot.slane %v460, %v468
      %v472 = vmul.f32 %v457, %v465
      %v473 = vmul.f32 %v458, %v469
      %474 = vst [vmem:[#allocation2 + $0x30] sm:$0xf] %v472
      %475 = vst [vmem:[#allocation2 + $0x38] sm:$0xf] %v473
      %476 = vrot.lane.b32.xlu0 %v307, 96
      %v477 = vpop.permute.xlu0 %476
      %478 = vrot.lane.b32.xlu0 %v309, 96
      %v479 = vpop.permute.xlu0 %478
      %vm480 = vcmp.lt.s32.totalorder %v316, 96
      %v481 = vsel %vm480, %v477, %v479
      %v482 = vsel %vm480, %v479, %v477
      %s483 = scalar_lea.vmem %s1, 7
      %v484 = vld [vmem:[%s483] ss:$8 sm:$0x3]
      %v486 = vlaneseq
      %v487 = vshrl.u32 %v486, 7
      %v488 = vsub.s32 0, %v487
      %v489 = vrot.slane %v484, %v488
      %v490 = vlaneseq
      %v491 = vshrl.u32 %v490, 7
      %v492 = vsub.s32 1, %v491
      %v493 = vrot.slane %v484, %v492
      %v496 = vmul.f32 %v481, %v489
      %v497 = vmul.f32 %v482, %v493
      %v500 = vrot.slane %v496, 4
      %v501 = vrot.slane %v497, 4
      %504 = vst [vmem:[#allocation2 + $0x30] sm:$0xf0] %v500
      %505 = vst [vmem:[#allocation2 + $0x38] sm:$0xf0] %v501
      %506 = vrot.lane.b32.xlu0 %v307, 94
      %v507 = vpop.permute.xlu0 %506
      %508 = vrot.lane.b32.xlu0 %v309, 94
      %v509 = vpop.permute.xlu0 %508
      %vm510 = vcmp.lt.s32.totalorder %v316, 94
      %v511 = vsel %vm510, %v507, %v509
      %v512 = vsel %vm510, %v509, %v507
      %s513 = scalar_lea.vmem %s1, 16
      %v514 = vld [vmem:[%s513] ss:$8 sm:$0x3]
      %v516 = vlaneseq
      %v517 = vshrl.u32 %v516, 7
      %v518 = vsub.s32 0, %v517
      %v519 = vrot.slane %v514, %v518
      %v520 = vlaneseq
      %v521 = vshrl.u32 %v520, 7
      %v522 = vsub.s32 1, %v521
      %v523 = vrot.slane %v514, %v522
      %v526 = vmul.f32 %v511, %v519
      %v527 = vmul.f32 %v512, %v523
      %528 = vst [vmem:[#allocation2 + $0x40] sm:$0xf] %v526
      %529 = vst [vmem:[#allocation2 + $0x48] sm:$0xf] %v527
      %530 = vrot.lane.b32.xlu0 %v307, 51
      %v531 = vpop.permute.xlu0 %530
      %532 = vrot.lane.b32.xlu0 %v309, 51
      %v533 = vpop.permute.xlu0 %532
      %vm534 = vcmp.lt.s32.totalorder %v316, 51
      %v535 = vsel %vm534, %v531, %v533
      %v536 = vsel %vm534, %v533, %v531
      %s537 = scalar_lea.vmem %s1, 17
      %v538 = vld [vmem:[%s537] ss:$8 sm:$0x3]
      %v540 = vlaneseq
      %v541 = vshrl.u32 %v540, 7
      %v542 = vsub.s32 0, %v541
      %v543 = vrot.slane %v538, %v542
      %v544 = vlaneseq
      %v545 = vshrl.u32 %v544, 7
      %v546 = vsub.s32 1, %v545
      %v547 = vrot.slane %v538, %v546
      %v550 = vmul.f32 %v536, %v543
      %v551 = vmul.f32 %v535, %v547
      %v554 = vrot.slane %v550, 4
      %v555 = vrot.slane %v551, 4
      %558 = vst [vmem:[#allocation2 + $0x40] sm:$0xf0] %v554
      %559 = vst [vmem:[#allocation2 + $0x48] sm:$0xf0] %v555
      %560 = vrot.lane.b32.xlu0 %v307, 48
      %v561 = vpop.permute.xlu0 %560
      %562 = vrot.lane.b32.xlu0 %v309, 48
      %v563 = vpop.permute.xlu0 %562
      %vm564 = vcmp.lt.s32.totalorder %v316, 48
      %v565 = vsel %vm564, %v561, %v563
      %v566 = vsel %vm564, %v563, %v561
      %s567 = scalar_lea.vmem %s1, 18
      %v568 = vld [vmem:[%s567] ss:$8 sm:$0x3]
      %v570 = vlaneseq
      %v571 = vshrl.u32 %v570, 7
      %v572 = vsub.s32 0, %v571
      %v573 = vrot.slane %v568, %v572
      %v574 = vlaneseq
      %v575 = vshrl.u32 %v574, 7
      %v576 = vsub.s32 1, %v575
      %v577 = vrot.slane %v568, %v576
      %v580 = vmul.f32 %v566, %v573
      %v581 = vmul.f32 %v565, %v577
      %582 = vst [vmem:[#allocation2 + $0x50] sm:$0xf] %v580
      %583 = vst [vmem:[#allocation2 + $0x58] sm:$0xf] %v581
      %584 = vrot.lane.b32.xlu0 %v307, 45
      %v585 = vpop.permute.xlu0 %584
      %586 = vrot.lane.b32.xlu0 %v309, 45
      %v587 = vpop.permute.xlu0 %586
      %vm588 = vcmp.lt.s32.totalorder %v316, 45
      %v589 = vsel %vm588, %v585, %v587
      %v590 = vsel %vm588, %v587, %v585
      %s591 = scalar_lea.vmem %s1, 19
      %v592 = vld [vmem:[%s591] ss:$8 sm:$0x3]
      %v594 = vlaneseq
      %v595 = vshrl.u32 %v594, 7
      %v596 = vsub.s32 0, %v595
      %v597 = vrot.slane %v592, %v596
      %v598 = vlaneseq
      %v599 = vshrl.u32 %v598, 7
      %v600 = vsub.s32 1, %v599
      %v601 = vrot.slane %v592, %v600
      %v604 = vmul.f32 %v590, %v597
      %v605 = vmul.f32 %v589, %v601
      %v608 = vrot.slane %v604, 4
      %v609 = vrot.slane %v605, 4
      %612 = vst [vmem:[#allocation2 + $0x50] sm:$0xf0] %v608
      %613 = vst [vmem:[#allocation2 + $0x58] sm:$0xf0] %v609
      %614 = vrot.lane.b32.xlu0 %v307, 3
      %v615 = vpop.permute.xlu0 %614
      %616 = vrot.lane.b32.xlu0 %v309, 3
      %v617 = vpop.permute.xlu0 %616
      %vm618 = vcmp.lt.s32.totalorder %v316, 3
      %v619 = vsel %vm618, %v615, %v617
      %v620 = vsel %vm618, %v617, %v615
      %s621 = scalar_lea.vmem %s1, 20
      %v622 = vld [vmem:[%s621] ss:$8 sm:$0x3]
      %v624 = vlaneseq
      %v625 = vshrl.u32 %v624, 7
      %v626 = vsub.s32 0, %v625
      %v627 = vrot.slane %v622, %v626
      %v628 = vlaneseq
      %v629 = vshrl.u32 %v628, 7
      %v630 = vsub.s32 1, %v629
      %v631 = vrot.slane %v622, %v630
      %v634 = vmul.f32 %v620, %v627
      %v635 = vmul.f32 %v619, %v631
      %636 = vst [vmem:[#allocation2 + $0x60] sm:$0xf] %v634
      %637 = vst [vmem:[#allocation2 + $0x68] sm:$0xf] %v635
      %v638 = vcombine.low %v307, %v307
      %640 = vst [vmem:[#allocation2 + $0x60] sm:$0xf0] %v638
      %641 = vst [vmem:[#allocation2 + $0x68] sm:$0xf0] %v307
      %642 = vrot.lane.b32.xlu0 %v307, 125
      %v643 = vpop.permute.xlu0 %642
      %644 = vrot.lane.b32.xlu0 %v309, 125
      %v645 = vpop.permute.xlu0 %644
      %vm646 = vcmp.lt.s32.totalorder %v316, 125
      %v647 = vsel %vm646, %v643, %v645
      %v648 = vsel %vm646, %v645, %v643
      %s649 = scalar_lea.vmem %s1, 22
      %v650 = vld [vmem:[%s649] ss:$8 sm:$0x3]
      %v652 = vlaneseq
      %v653 = vshrl.u32 %v652, 7
      %v654 = vsub.s32 0, %v653
      %v655 = vrot.slane %v650, %v654
      %v656 = vlaneseq
      %v657 = vshrl.u32 %v656, 7
      %v658 = vsub.s32 1, %v657
      %v659 = vrot.slane %v650, %v658
      %v662 = vmul.f32 %v647, %v655
      %v663 = vmul.f32 %v648, %v659
      %664 = vst [vmem:[#allocation2 + $0x70] sm:$0xf] %v662
      %665 = vst [vmem:[#allocation2 + $0x78] sm:$0xf] %v663
      %666 = vrot.lane.b32.xlu0 %v307, 83
      %v667 = vpop.permute.xlu0 %666
      %668 = vrot.lane.b32.xlu0 %v309, 83
      %v669 = vpop.permute.xlu0 %668
      %vm670 = vcmp.lt.s32.totalorder %v316, 83
      %v671 = vsel %vm670, %v667, %v669
      %v672 = vsel %vm670, %v669, %v667
      %s673 = scalar_lea.vmem %s1, 23
      %v674 = vld [vmem:[%s673] ss:$8 sm:$0x3]
      %v676 = vlaneseq
      %v677 = vshrl.u32 %v676, 7
      %v678 = vsub.s32 0, %v677
      %v679 = vrot.slane %v674, %v678
      %v680 = vlaneseq
      %v681 = vshrl.u32 %v680, 7
      %v682 = vsub.s32 1, %v681
      %v683 = vrot.slane %v674, %v682
      %v686 = vmul.f32 %v671, %v679
      %v687 = vmul.f32 %v672, %v683
      %v690 = vrot.slane %v686, 4
      %v691 = vrot.slane %v687, 4
      %694 = vst [vmem:[#allocation2 + $0x70] sm:$0xf0] %v690
      %695 = vst [vmem:[#allocation2 + $0x78] sm:$0xf0] %v691
      %696 = vrot.lane.b32.xlu0 %v307, 80
      %v697 = vpop.permute.xlu0 %696
      %698 = vrot.lane.b32.xlu0 %v309, 80
      %v699 = vpop.permute.xlu0 %698
      %vm700 = vcmp.lt.s32.totalorder %v316, 80
      %v701 = vsel %vm700, %v697, %v699
      %v702 = vsel %vm700, %v699, %v697
      %s703 = scalar_lea.vmem %s1, 32
      %v704 = vld [vmem:[%s703] ss:$8 sm:$0x3]
      %v706 = vlaneseq
      %v707 = vshrl.u32 %v706, 7
      %v708 = vsub.s32 0, %v707
      %v709 = vrot.slane %v704, %v708
      %v710 = vlaneseq
      %v711 = vshrl.u32 %v710, 7
      %v712 = vsub.s32 1, %v711
      %v713 = vrot.slane %v704, %v712
      %v716 = vmul.f32 %v701, %v709
      %v717 = vmul.f32 %v702, %v713
      %718 = vst [vmem:[#allocation2 + $0x80] sm:$0xf] %v716
      %719 = vst [vmem:[#allocation2 + $0x88] sm:$0xf] %v717
      %720 = vrot.lane.b32.xlu0 %v307, 77
      %v721 = vpop.permute.xlu0 %720
      %722 = vrot.lane.b32.xlu0 %v309, 77
      %v723 = vpop.permute.xlu0 %722
      %vm724 = vcmp.lt.s32.totalorder %v316, 77
      %v725 = vsel %vm724, %v721, %v723
      %v726 = vsel %vm724, %v723, %v721
      %s727 = scalar_lea.vmem %s1, 33
      %v728 = vld [vmem:[%s727] ss:$8 sm:$0x3]
      %v730 = vlaneseq
      %v731 = vshrl.u32 %v730, 7
      %v732 = vsub.s32 0, %v731
      %v733 = vrot.slane %v728, %v732
      %v734 = vlaneseq
      %v735 = vshrl.u32 %v734, 7
      %v736 = vsub.s32 1, %v735
      %v737 = vrot.slane %v728, %v736
      %v740 = vmul.f32 %v725, %v733
      %v741 = vmul.f32 %v726, %v737
      %v744 = vrot.slane %v740, 4
      %v745 = vrot.slane %v741, 4
      %748 = vst [vmem:[#allocation2 + $0x80] sm:$0xf0] %v744
      %749 = vst [vmem:[#allocation2 + $0x88] sm:$0xf0] %v745
      %750 = vrot.lane.b32.xlu0 %v307, 68
      %v751 = vpop.permute.xlu0 %750
      %752 = vrot.lane.b32.xlu0 %v309, 68
      %v753 = vpop.permute.xlu0 %752
      %vm754 = vcmp.lt.s32.totalorder %v316, 68
      %v755 = vsel %vm754, %v751, %v753
      %v756 = vsel %vm754, %v753, %v751
      %s757 = scalar_lea.vmem %s1, 34
      %v758 = vld [vmem:[%s757] ss:$8 sm:$0x3]
      %v760 = vlaneseq
      %v761 = vshrl.u32 %v760, 7
      %v762 = vsub.s32 0, %v761
      %v763 = vrot.slane %v758, %v762
      %v764 = vlaneseq
      %v765 = vshrl.u32 %v764, 7
      %v766 = vsub.s32 1, %v765
      %v767 = vrot.slane %v758, %v766
      %v770 = vmul.f32 %v756, %v763
      %v771 = vmul.f32 %v755, %v767
      %772 = vst [vmem:[#allocation2 + $0x90] sm:$0xf] %v770
      %773 = vst [vmem:[#allocation2 + $0x98] sm:$0xf] %v771
      %774 = vrot.lane.b32.xlu0 %v307, 64
      %v775 = vpop.permute.xlu0 %774
      %776 = vrot.lane.b32.xlu0 %v309, 64
      %v777 = vpop.permute.xlu0 %776
      %vm778 = vcmp.lt.s32.totalorder %v316, 64
      %v779 = vsel %vm778, %v775, %v777
      %v780 = vsel %vm778, %v777, %v775
      %s781 = scalar_lea.vmem %s1, 35
      %v782 = vld [vmem:[%s781] ss:$8 sm:$0x3]
      %v784 = vlaneseq
      %v785 = vshrl.u32 %v784, 7
      %v786 = vsub.s32 0, %v785
      %v787 = vrot.slane %v782, %v786
      %v788 = vlaneseq
      %v789 = vshrl.u32 %v788, 7
      %v790 = vsub.s32 1, %v789
      %v791 = vrot.slane %v782, %v790
      %v794 = vmul.f32 %v780, %v787
      %v795 = vmul.f32 %v779, %v791
      %v798 = vrot.slane %v794, 4
      %v799 = vrot.slane %v795, 4
      %802 = vst [vmem:[#allocation2 + $0x90] sm:$0xf0] %v798
      %803 = vst [vmem:[#allocation2 + $0x98] sm:$0xf0] %v799
      %804 = vrot.lane.b32.xlu0 %v307, 60
      %v805 = vpop.permute.xlu0 %804
      %806 = vrot.lane.b32.xlu0 %v309, 60
      %v807 = vpop.permute.xlu0 %806
      %vm808 = vcmp.lt.s32.totalorder %v316, 60
      %v809 = vsel %vm808, %v805, %v807
      %v810 = vsel %vm808, %v807, %v805
      %s811 = scalar_lea.vmem %s1, 36
      %v812 = vld [vmem:[%s811] ss:$8 sm:$0x3]
      %v814 = vlaneseq
      %v815 = vshrl.u32 %v814, 7
      %v816 = vsub.s32 0, %v815
      %v817 = vrot.slane %v812, %v816
      %v818 = vlaneseq
      %v819 = vshrl.u32 %v818, 7
      %v820 = vsub.s32 1, %v819
      %v821 = vrot.slane %v812, %v820
      %v824 = vmul.f32 %v810, %v817
      %v825 = vmul.f32 %v809, %v821
      %826 = vst [vmem:[#allocation2 + $0xa0] sm:$0xf] %v824
      %827 = vst [vmem:[#allocation2 + $0xa8] sm:$0xf] %v825
      %828 = vrot.lane.b32.xlu0 %v307, 4
      %v829 = vpop.permute.xlu0 %828
      %830 = vrot.lane.b32.xlu0 %v309, 4
      %v831 = vpop.permute.xlu0 %830
      %vm832 = vcmp.lt.s32.totalorder %v316, 4
      %v833 = vsel %vm832, %v829, %v831
      %v834 = vsel %vm832, %v831, %v829
      %s835 = scalar_lea.vmem %s1, 37
      %v836 = vld [vmem:[%s835] ss:$8 sm:$0x3]
      %v838 = vlaneseq
      %v839 = vshrl.u32 %v838, 7
      %v840 = vsub.s32 0, %v839
      %v841 = vrot.slane %v836, %v840
      %v842 = vlaneseq
      %v843 = vshrl.u32 %v842, 7
      %v844 = vsub.s32 1, %v843
      %v845 = vrot.slane %v836, %v844
      %v848 = vmul.f32 %v834, %v841
      %v849 = vmul.f32 %v833, %v845
      %v852 = vrot.slane %v848, 4
      %v853 = vrot.slane %v849, 4
      %856 = vst [vmem:[#allocation2 + $0xa0] sm:$0xf0] %v852
      %857 = vst [vmem:[#allocation2 + $0xa8] sm:$0xf0] %v853
      %858 = vst [vmem:[#allocation2 + $0xb0] sm:$0xf] %v307
      %859 = vst [vmem:[#allocation2 + $0xb8] sm:$0xf] %v309
      %860 = vrot.lane.b32.xlu0 %v307, 124
      %v861 = vpop.permute.xlu0 %860
      %862 = vrot.lane.b32.xlu0 %v309, 124
      %v863 = vpop.permute.xlu0 %862
      %vm864 = vcmp.lt.s32.totalorder %v316, 124
      %v865 = vsel %vm864, %v861, %v863
      %v866 = vsel %vm864, %v863, %v861
      %s867 = scalar_lea.vmem %s1, 39
      %v868 = vld [vmem:[%s867] ss:$8 sm:$0x3]
      %v870 = vlaneseq
      %v871 = vshrl.u32 %v870, 7
      %v872 = vsub.s32 0, %v871
      %v873 = vrot.slane %v868, %v872
      %v874 = vlaneseq
      %v875 = vshrl.u32 %v874, 7
      %v876 = vsub.s32 1, %v875
      %v877 = vrot.slane %v868, %v876
      %v880 = vmul.f32 %v865, %v873
      %v881 = vmul.f32 %v866, %v877
      %v884 = vrot.slane %v880, 4
      %v885 = vrot.slane %v881, 4
      %888 = vst [vmem:[#allocation2 + $0xb0] sm:$0xf0] %v884
      %889 = vst [vmem:[#allocation2 + $0xb8] sm:$0xf0] %v885
      %s890 = scalar_lea.vmem %s1, 48
      %v891 = vld [vmem:[%s890] ss:$8 sm:$0x3]
      %v893 = vlaneseq
      %v894 = vshrl.u32 %v893, 7
      %v895 = vsub.s32 0, %v894
      %v896 = vrot.slane %v891, %v895
      %v897 = vlaneseq
      %v898 = vshrl.u32 %v897, 7
      %v899 = vsub.s32 1, %v898
      %v900 = vrot.slane %v891, %v899
      %v903 = vmul.f32 %v755, %v896
      %v904 = vmul.f32 %v756, %v900
      %905 = vst [vmem:[#allocation2 + $0xc0] sm:$0xf] %v903
      %906 = vst [vmem:[#allocation2 + $0xc8] sm:$0xf] %v904
      %s907 = scalar_lea.vmem %s1, 49
      %v908 = vld [vmem:[%s907] ss:$8 sm:$0x3]
      %v910 = vlaneseq
      %v911 = vshrl.u32 %v910, 7
      %v912 = vsub.s32 0, %v911
      %v913 = vrot.slane %v908, %v912
      %v914 = vlaneseq
      %v915 = vshrl.u32 %v914, 7
      %v916 = vsub.s32 1, %v915
      %v917 = vrot.slane %v908, %v916
      %v920 = vmul.f32 %v779, %v913
      %v921 = vmul.f32 %v780, %v917
      %v924 = vrot.slane %v920, 4
      %v925 = vrot.slane %v921, 4
      %928 = vst [vmem:[#allocation2 + $0xc0] sm:$0xf0] %v924
      %929 = vst [vmem:[#allocation2 + $0xc8] sm:$0xf0] %v925
      %s930 = scalar_lea.vmem %s1, 50
      %v931 = vld [vmem:[%s930] ss:$8 sm:$0x3]
      %v933 = vlaneseq
      %v934 = vshrl.u32 %v933, 7
      %v935 = vsub.s32 0, %v934
      %v936 = vrot.slane %v931, %v935
      %v937 = vlaneseq
      %v938 = vshrl.u32 %v937, 7
      %v939 = vsub.s32 1, %v938
      %v940 = vrot.slane %v931, %v939
      %v943 = vmul.f32 %v809, %v936
      %v944 = vmul.f32 %v810, %v940
      %945 = vst [vmem:[#allocation2 + $0xd0] sm:$0xf] %v943
      %946 = vst [vmem:[#allocation2 + $0xd8] sm:$0xf] %v944
      %v947 = vld [vmem:[%s2] sm:$0xf]
      %v948 = vld [vmem:[%s2 + $0x4] sm:$0xf]
      %v949 = vld [vmem:[%s2 + $0x8] sm:$0x1]
      %v950 = vld [vmem:[#allocation2] sm:$0xff]
      %v951 = vld [vmem:[#allocation2 + $0x8] sm:$0xff]
      %v952 = vld [vmem:[#allocation2 + $0x10] sm:$0xff]
      %v953 = vld [vmem:[#allocation2 + $0x18] sm:$0xff]
      %v954 = vld [vmem:[#allocation2 + $0x20] sm:$0xff]
      %v955 = vld [vmem:[#allocation2 + $0x28] sm:$0xff]
      %v956 = vld [vmem:[#allocation2 + $0x30] sm:$0xff]
      %v957 = vld [vmem:[#allocation2 + $0x38] sm:$0xff]
      %v958 = vld [vmem:[#allocation2 + $0x40] sm:$0xff]
      %v959 = vld [vmem:[#allocation2 + $0x48] sm:$0xff]
      %v960 = vld [vmem:[#allocation2 + $0x50] sm:$0xff]
      %v961 = vld [vmem:[#allocation2 + $0x58] sm:$0xff]
      %v962 = vld [vmem:[#allocation2 + $0x60] sm:$0xff]
      %v963 = vld [vmem:[#allocation2 + $0x68] sm:$0xff]
      %v964 = vld [vmem:[#allocation2 + $0x70] sm:$0xff]
      %v965 = vld [vmem:[#allocation2 + $0x78] sm:$0xff]
      %v966 = vld [vmem:[#allocation2 + $0x80] sm:$0xff]
      %v967 = vld [vmem:[#allocation2 + $0x88] sm:$0xff]
      %v968 = vld [vmem:[#allocation2 + $0x90] sm:$0xff]
      %v969 = vld [vmem:[#allocation2 + $0x98] sm:$0xff]
      %v970 = vld [vmem:[#allocation2 + $0xa0] sm:$0xff]
      %v971 = vld [vmem:[#allocation2 + $0xa8] sm:$0xff]
      %v972 = vld [vmem:[#allocation2 + $0xb0] sm:$0xff]
      %v973 = vld [vmem:[#allocation2 + $0xb8] sm:$0xff]
      %v974 = vld [vmem:[#allocation2 + $0xc0] sm:$0xff]
      %v975 = vld [vmem:[#allocation2 + $0xc8] sm:$0xff]
      %v976 = vld [vmem:[#allocation2 + $0xd0] sm:$0xf]
      %v977 = vld [vmem:[#allocation2 + $0xd8] sm:$0xf]
      %v978 = vpack.c.bf16 %v952, %v950
      %v979 = vpack.c.bf16 %v953, %v951
      %v980 = vpack.c.bf16 %v956, %v954
      %v981 = vpack.c.bf16 %v957, %v955
      %v982 = vpack.c.bf16 %v960, %v958
      %v983 = vpack.c.bf16 %v961, %v959
      %v984 = vpack.c.bf16 %v964, %v962
      %v985 = vpack.c.bf16 %v965, %v963
      %v986 = vpack.c.bf16 %v968, %v966
      %v987 = vpack.c.bf16 %v969, %v967
      %v988 = vpack.c.bf16 %v972, %v970
      %v989 = vpack.c.bf16 %v973, %v971
      %v990 = vpack.c.bf16 %v976, %v974
      %v991 = vpack.c.bf16 %v977, %v975
      %v992 = vld [vmem:[%s3] sm:$0xff]
      %v993 = vld [vmem:[%s3 + $0x8] sm:$0xff]
      %v994 = vld [vmem:[%s3 + $0x10] sm:$0x3]
      %996 = vset.pattern.permute.xlu0 0
      %997 = vperm.xlu0 %996, %v992
      %v998 = vpop.permute.xlu0 %997
      %1001 = vset.pattern.permute.xlu0 0
      %1002 = vperm.xlu0 %1001, %v993
      %v1003 = vpop.permute.xlu0 %1002
      %1006 = vset.pattern.permute.xlu0 0
      %1007 = vperm.xlu0 %1006, %v994
      %v1008 = vpop.permute.xlu0 %1007
      %v1013 = vunpack.c.l.b16 %v947
      %v1014 = vunpack.c.l.b16 %v948
      %v1015 = vunpack.c.l.b16 %v949
      %v1016 = vpack.c.b16 %v1014, %v1013
      %v1017 = vpack.c.b16 %v1015, %v1015
      %vm1018 = vcmask 883712
      %v1020 = vsel %vm1018, %v1016, 0
      %v1023 = vsel %vm1018, %v1017, 0
      %vm1025 = vcmask 1045504
      %v1027 = vsel %vm1025, %v990, 0
      %v1030 = vsel %vm1025, %v991, 0
      %1032 = vmatprep.subr.bf16.mxu0 %v979
      %1033 = vmatpush1.bf16.msra.mxu0 %v978
      %1034 = vmatprep.subr.bf16.mxu0 %v981
      %1035 = vmatpush1.bf16.msra.mxu0 %v980
      %1036 = vmatprep.subr.bf16.mxu0 %v983
      %1037 = vmatpush1.bf16.msra.mxu0 %v982
      %1038 = vmatprep.subr.bf16.mxu0 %v985
      %1039 = vmatpush1.bf16.msra.mxu0 %v984
      %1040 = vmatprep.subr.bf16.mxu0 %v987
      %1041 = vmatpush1.bf16.msra.mxu0 %v986
      %1042 = vmatprep.subr.bf16.mxu0 %v989
      %1043 = vmatpush1.bf16.msra.mxu0 %v988
      %1044 = vmatprep.subr.bf16.mxu0 %v1030
      %1045 = vmatpush1.bf16.msra.mxu0 %v1027
      %1046 = vmatprep.subr.bf16.mxu0 0
      %1047 = vmatpush1.bf16.msra.mxu0 0
      %1048 = vmatprep.subr.bf16.mxu0 0
      %1049 = vmatpush1.bf16.msra.mxu0 0
      %1050 = vmatprep.subr.bf16.mxu0 0
      %1051 = vmatpush1.bf16.msra.mxu0 0
      %1052 = vmatprep.subr.bf16.mxu0 0
      %1053 = vmatpush1.bf16.msra.mxu0 0
      %1054 = vmatprep.subr.bf16.mxu0 0
      %1055 = vmatpush1.bf16.msra.mxu0 0
      %1056 = vmatprep.subr.bf16.mxu0 0
      %1057 = vmatpush1.bf16.msra.mxu0 0
      %1058 = vmatprep.subr.bf16.mxu0 0
      %1059 = vmatpush1.bf16.msra.mxu0 0
      %1060 = vmatprep.subr.bf16.mxu0 0
      %1061 = vmatpush1.bf16.msra.mxu0 0
      %1062 = vmatprep.subr.bf16.mxu0 0
      %1063 = vmatpush1.bf16.msra.mxu0 0
      %1064 = vmatprep.mubr.bf16.mxu0 0
      %1065 = vmatmul.mubr.bf16.gmra.mrb[0].mxu0 %v1020
      %v1066 = vpop.f32.mrb[0].mxu0
      %v1067 = vadd.f32 %v998, %v1066
      %v1068 = vpop.f32.mrb[0].mxu0
      %v1069 = vadd.f32 %v998, %v1068
      %v1070 = vpop.f32.mrb[0].mxu0
      %v1071 = vadd.f32 %v1003, %v1070
      %v1072 = vpop.f32.mrb[0].mxu0
      %v1073 = vadd.f32 %v1003, %v1072
      %1074 = vmatprep.mubr.bf16.mxu0 0
      %1075 = vmatmul.mubr.bf16.gmra.mrb[0].mxu0 %v1023
      %v1076 = vpop.f32.mrb[0].mxu0
      %v1077 = vadd.f32 %v1008, %v1076
      %v1078 = vpop.f32.mrb[0].mxu0
      %v1079 = vadd.f32 %v1008, %v1078
      %v1080 = vpop.f32.mrb[0].mxu0
      %v1081 = vpop.f32.mrb[0].mxu0
      %1082 = vdwg.mxu0
      %1083 = vrot.lane.b32.xlu0 %v1067, 127
      %v1084 = vpop.permute.xlu0 %1083
      %1085 = vrot.lane.b32.xlu0 %v1071, 127
      %v1086 = vpop.permute.xlu0 %1085
      %1087 = vrot.lane.b32.xlu0 %v1077, 127
      %v1088 = vpop.permute.xlu0 %1087
      %1089 = vrot.lane.b32.xlu0 %v1069, 127
      %v1090 = vpop.permute.xlu0 %1089
      %1091 = vrot.lane.b32.xlu0 %v1073, 127
      %v1092 = vpop.permute.xlu0 %1091
      %1093 = vrot.lane.b32.xlu0 %v1079, 127
      %v1094 = vpop.permute.xlu0 %1093
      %vm1095 = vcmp.lt.s32.totalorder %v316, 127
      %v1096 = vsel %vm1095, %v1084, %v1090
      %v1097 = vsel %vm1095, %v1086, %v1092
      %v1098 = vsel %vm1095, %v1088, %v1094
      %v1099 = vsel %vm1095, %v1090, %v1084
      %v1100 = vsel %vm1095, %v1092, %v1086
      %v1101 = vsel %vm1095, %v1094, %v1088
      %v1102 = vmax.f32 %v1067, %v1096
      %v1103 = vmax.f32 %v1069, %v1099
      %v1104 = vmax.f32 %v1071, %v1097
      %v1105 = vmax.f32 %v1073, %v1100
      %v1106 = vmax.f32 %v1077, %v1098
      %v1107 = vmax.f32 %v1079, %v1101
      %v1108 = vpack.c.bf16 %v1104, %v1102
      %v1109 = vpack.c.bf16 %v1105, %v1103
      %v1110 = vpack.c.bf16 %v1106, %v1106
      %v1111 = vpack.c.bf16 %v1107, %v1107
      %v1112 = vld [vmem:[%s6] sm:$0xf]
      %v1113 = vld [vmem:[%s6 + $0x4] sm:$0xf]
      %v1114 = vld [vmem:[%s6 + $0x8] sm:$0xf]
      %v1115 = vld [vmem:[%s6 + $0xc] sm:$0xf]
      %v1116 = vld [vmem:[%s6 + $0x10] sm:$0xf]
      %v1117 = vld [vmem:[%s6 + $0x14] sm:$0xf]
      %v1118 = vld [vmem:[%s6 + $0x18] sm:$0xf]
      %v1119 = vld [vmem:[%s6 + $0x1c] sm:$0xf]
      %v1120 = vld [vmem:[%s6 + $0x20] sm:$0xf]
      %v1121 = vld [vmem:[%s6 + $0x24] sm:$0xf]
      %v1122 = vld [vmem:[%s6 + $0x28] sm:$0xf]
      %v1123 = vld [vmem:[%s6 + $0x2c] sm:$0xf]
      %v1124 = vld [vmem:[%s6 + $0x30] sm:$0xf]
      %v1125 = vld [vmem:[%s6 + $0x34] sm:$0xf]
      %v1126 = vld [vmem:[%s6 + $0x38] sm:$0xf]
      %v1127 = vld [vmem:[%s6 + $0x3c] sm:$0xf]
      %v1128 = vld [vmem:[%s6 + $0x40] sm:$0xf]
      %v1129 = vld [vmem:[%s6 + $0x44] sm:$0xf]
      %v1130 = vld [vmem:[%s6 + $0x48] sm:$0xf]
      %v1131 = vld [vmem:[%s6 + $0x4c] sm:$0xf]
      %v1132 = vld [vmem:[%s6 + $0x50] sm:$0xf]
      %v1133 = vld [vmem:[%s6 + $0x54] sm:$0xf]
      %v1134 = vld [vmem:[%s6 + $0x58] sm:$0xf]
      %v1135 = vld [vmem:[%s6 + $0x5c] sm:$0xf]
      %v1136 = vld [vmem:[%s6 + $0x60] sm:$0xf]
      %v1137 = vld [vmem:[%s6 + $0x64] sm:$0xf]
      %v1138 = vld [vmem:[%s6 + $0x68] sm:$0xf]
      %v1139 = vld [vmem:[%s6 + $0x6c] sm:$0xf]
      %v1140 = vld [vmem:[%s6 + $0x70] sm:$0xf]
      %v1141 = vld [vmem:[%s6 + $0x74] sm:$0xf]
      %v1142 = vld [vmem:[%s6 + $0x78] sm:$0xf]
      %v1143 = vld [vmem:[%s6 + $0x7c] sm:$0xf]
      %v1176 = vunpack.c.l.b16 %v1112
      %v1177 = vunpack.c.l.b16 %v1113
      %v1178 = vunpack.c.l.b16 %v1114
      %v1179 = vunpack.c.l.b16 %v1115
      %v1180 = vunpack.c.l.b16 %v1116
      %v1181 = vunpack.c.l.b16 %v1117
      %v1182 = vunpack.c.l.b16 %v1118
      %v1183 = vunpack.c.l.b16 %v1119
      %v1184 = vunpack.c.l.b16 %v1120
      %v1185 = vunpack.c.l.b16 %v1121
      %v1186 = vunpack.c.l.b16 %v1122
      %v1187 = vunpack.c.l.b16 %v1123
      %v1188 = vunpack.c.l.b16 %v1124
      %v1189 = vunpack.c.l.b16 %v1125
      %v1190 = vunpack.c.l.b16 %v1126
      %v1191 = vunpack.c.l.b16 %v1127
      %v1192 = vunpack.c.l.b16 %v1128
      %v1193 = vunpack.c.l.b16 %v1129
      %v1194 = vunpack.c.l.b16 %v1130
      %v1195 = vunpack.c.l.b16 %v1131
      %v1196 = vunpack.c.l.b16 %v1132
      %v1197 = vunpack.c.l.b16 %v1133
      %v1198 = vunpack.c.l.b16 %v1134
      %v1199 = vunpack.c.l.b16 %v1135
      %v1200 = vunpack.c.l.b16 %v1136
      %v1201 = vunpack.c.l.b16 %v1137
      %v1202 = vunpack.c.l.b16 %v1138
      %v1203 = vunpack.c.l.b16 %v1139
      %v1204 = vunpack.c.l.b16 %v1140
      %v1205 = vunpack.c.l.b16 %v1141
      %v1206 = vunpack.c.l.b16 %v1142
      %v1207 = vunpack.c.l.b16 %v1143
      %v1208 = vpack.c.b16 %v1177, %v1176
      %v1209 = vpack.c.b16 %v1179, %v1178
      %v1210 = vpack.c.b16 %v1181, %v1180
      %v1211 = vpack.c.b16 %v1183, %v1182
      %v1212 = vpack.c.b16 %v1185, %v1184
      %v1213 = vpack.c.b16 %v1187, %v1186
      %v1214 = vpack.c.b16 %v1189, %v1188
      %v1215 = vpack.c.b16 %v1191, %v1190
      %v1216 = vpack.c.b16 %v1193, %v1192
      %v1217 = vpack.c.b16 %v1195, %v1194
      %v1218 = vpack.c.b16 %v1197, %v1196
      %v1219 = vpack.c.b16 %v1199, %v1198
      %v1220 = vpack.c.b16 %v1201, %v1200
      %v1221 = vpack.c.b16 %v1203, %v1202
      %v1222 = vpack.c.b16 %v1205, %v1204
      %v1223 = vpack.c.b16 %v1207, %v1206
      %1240 = vmatprep.subr.bf16.mxu0 0
      %1241 = vmatpush1.bf16.msra.mxu0 %v1208
      %1242 = vmatprep.subr.bf16.mxu0 0
      %1243 = vmatpush1.bf16.msra.mxu0 %v1209
      %1244 = vmatprep.subr.bf16.mxu0 0
      %1245 = vmatpush1.bf16.msra.mxu0 %v1210
      %1246 = vmatprep.subr.bf16.mxu0 0
      %1247 = vmatpush1.bf16.msra.mxu0 %v1211
      %1248 = vmatprep.subr.bf16.mxu0 0
      %1249 = vmatpush1.bf16.msra.mxu0 %v1212
      %1250 = vmatprep.subr.bf16.mxu0 0
      %1251 = vmatpush1.bf16.msra.mxu0 %v1213
      %1252 = vmatprep.subr.bf16.mxu0 0
      %1253 = vmatpush1.bf16.msra.mxu0 %v1214
      %1254 = vmatprep.subr.bf16.mxu0 0
      %1255 = vmatpush1.bf16.msra.mxu0 %v1215
      %1256 = vmatprep.subr.bf16.mxu0 0
      %1257 = vmatpush1.bf16.msra.mxu0 %v1216
      %1258 = vmatprep.subr.bf16.mxu0 0
      %1259 = vmatpush1.bf16.msra.mxu0 %v1217
      %1260 = vmatprep.subr.bf16.mxu0 0
      %1261 = vmatpush1.bf16.msra.mxu0 %v1218
      %1262 = vmatprep.subr.bf16.mxu0 0
      %1263 = vmatpush1.bf16.msra.mxu0 %v1219
      %1264 = vmatprep.subr.bf16.mxu0 0
      %1265 = vmatpush1.bf16.msra.mxu0 %v1220
      %1266 = vmatprep.subr.bf16.mxu0 0
      %1267 = vmatpush1.bf16.msra.mxu0 %v1221
      %1268 = vmatprep.subr.bf16.mxu0 0
      %1269 = vmatpush1.bf16.msra.mxu0 %v1222
      %1270 = vmatprep.subr.bf16.mxu0 0
      %1271 = vmatpush1.bf16.msra.mxu0 %v1223
      %1272 = vmatprep.mubr.bf16.mxu0 %v1109
      %1273 = vmatmul.mubr.bf16.gmra.mrb[0].mxu0 %v1108
      %v1274 = vpop.f32.mrb[0].mxu0
      %v1275 = vadd.f32 0.0, %v1274
      %v1276 = vpop.f32.mrb[0].mxu0
      %v1277 = vpop.f32.mrb[0].mxu0
      %v1278 = vadd.f32 0.0, %v1277
      %v1279 = vpop.f32.mrb[0].mxu0
      %1280 = vmatprep.mubr.bf16.mxu0 %v1111
      %1281 = vmatmul.mubr.bf16.gmra.mrb[0].mxu0 %v1110
      %v1282 = vpop.f32.mrb[0].mxu0
      %v1283 = vadd.f32 0.0, %v1282
      %v1284 = vpop.f32.mrb[0].mxu0
      %v1285 = vpop.f32.mrb[0].mxu0
      %v1286 = vpop.f32.mrb[0].mxu0
      %1287 = vdwg.mxu0
      %v1288 = vld [vmem:[%s4] sm:$0xf]
      %v1289 = vld [vmem:[%s4 + $0x4] sm:$0xf]
      %v1290 = vld [vmem:[%s4 + $0x8] sm:$0x3]
      %v1291 = vpack.c.bf16 %v1278, %v1275
      %v1292 = vpack.c.bf16 %v1283, %v1283
      %v1293 = vld [vmem:[%s5] sm:$0xff]
      %v1294 = vld [vmem:[%s5 + $0x8] sm:$0xff]
      %v1295 = vld [vmem:[%s5 + $0x10] sm:$0x7]
      %1297 = vset.pattern.permute.xlu0 0
      %1298 = vperm.xlu0 %1297, %v1293
      %v1299 = vpop.permute.xlu0 %1298
      %1302 = vset.pattern.permute.xlu0 0
      %1303 = vperm.xlu0 %1302, %v1294
      %v1304 = vpop.permute.xlu0 %1303
      %1307 = vset.pattern.permute.xlu0 0
      %1308 = vperm.xlu0 %1307, %v1295
      %v1309 = vpop.permute.xlu0 %1308
      %v1314 = vunpack.c.l.b16 %v1288
      %v1315 = vunpack.c.l.b16 %v1289
      %v1316 = vunpack.c.l.b16 %v1290
      %v1317 = vpack.c.b16 %v1315, %v1314
      %v1318 = vpack.c.b16 %v1316, %v1316
      %vm1319 = vcmask 146432
      %v1321 = vsel %vm1319, %v1317, 0
      %v1324 = vsel %vm1319, %v1318, 0
      %vm1326 = vcmask 1040384
      %v1328 = vsel %vm1326, %v1292, 0
      %1330 = vmatprep.subr.bf16.mxu0 0
      %1331 = vmatpush1.bf16.msra.mxu0 %v1291
      %1332 = vmatprep.subr.bf16.mxu0 0
      %1333 = vmatpush1.bf16.msra.mxu0 %v1328
      %1334 = vmatprep.subr.bf16.mxu0 0
      %1335 = vmatpush1.bf16.msra.mxu0 0
      %1336 = vmatprep.subr.bf16.mxu0 0
      %1337 = vmatpush1.bf16.msra.mxu0 0
      %1338 = vmatprep.subr.bf16.mxu0 0
      %1339 = vmatpush1.bf16.msra.mxu0 0
      %1340 = vmatprep.subr.bf16.mxu0 0
      %1341 = vmatpush1.bf16.msra.mxu0 0
      %1342 = vmatprep.subr.bf16.mxu0 0
      %1343 = vmatpush1.bf16.msra.mxu0 0
      %1344 = vmatprep.subr.bf16.mxu0 0
      %1345 = vmatpush1.bf16.msra.mxu0 0
      %1346 = vmatprep.subr.bf16.mxu0 0
      %1347 = vmatpush1.bf16.msra.mxu0 0
      %1348 = vmatprep.subr.bf16.mxu0 0
      %1349 = vmatpush1.bf16.msra.mxu0 0
      %1350 = vmatprep.subr.bf16.mxu0 0
      %1351 = vmatpush1.bf16.msra.mxu0 0
      %1352 = vmatprep.subr.bf16.mxu0 0
      %1353 = vmatpush1.bf16.msra.mxu0 0
      %1354 = vmatprep.subr.bf16.mxu0 0
      %1355 = vmatpush1.bf16.msra.mxu0 0
      %1356 = vmatprep.subr.bf16.mxu0 0
      %1357 = vmatpush1.bf16.msra.mxu0 0
      %1358 = vmatprep.subr.bf16.mxu0 0
      %1359 = vmatpush1.bf16.msra.mxu0 0
      %1360 = vmatprep.subr.bf16.mxu0 0
      %1361 = vmatpush1.bf16.msra.mxu0 0
      %1362 = vmatprep.mubr.bf16.mxu0 0
      %1363 = vmatmul.mubr.bf16.gmra.mrb[0].mxu0 %v1321
      %v1364 = vpop.f32.mrb[0].mxu0
      %v1365 = vadd.f32 %v1299, %v1364
      %v1366 = vpop.f32.mrb[0].mxu0
      %v1367 = vpop.f32.mrb[0].mxu0
      %v1368 = vadd.f32 %v1304, %v1367
      %v1369 = vpop.f32.mrb[0].mxu0
      %1370 = vmatprep.mubr.bf16.mxu0 0
      %1371 = vmatmul.mubr.bf16.gmra.mrb[0].mxu0 %v1324
      %v1372 = vpop.f32.mrb[0].mxu0
      %v1373 = vadd.f32 %v1309, %v1372
      %v1374 = vpop.f32.mrb[0].mxu0
      %v1375 = vpop.f32.mrb[0].mxu0
      %v1376 = vpop.f32.mrb[0].mxu0
      %1377 = vdwg.mxu0
      %v1378 = vpack.c.bf16 %v1368, %v1365
      %v1379 = vpack.c.bf16 %v1373, %v1373
      %v1380 = vld [vmem:[%s7] sm:$0xff]
      %v1381 = vld [vmem:[%s7 + $0x8] sm:$0xff]
      %v1384 = vunpack.c.l.b16 %v1380
      %v1385 = vunpack.c.h.b16 %v1380
      %v1386 = vunpack.c.l.b16 %v1381
      %v1387 = vunpack.c.h.b16 %v1381
      %v1388 = vpack.c.b16 %v1386, %v1384
      %v1389 = vpack.c.b16 %v1387, %v1385
      %vm1392 = vcmask 130048
      %v1394 = vsel %vm1392, %v1378, 0
      %v1397 = vsel %vm1392, %v1379, 0
      %1399 = vmatprep.subr.bf16.mxu0 %v1389
      %1400 = vmatpush1.bf16.msra.mxu0 %v1388
      %1401 = vmatprep.subr.bf16.mxu0 0
      %1402 = vmatpush1.bf16.msra.mxu0 0
      %1403 = vmatprep.subr.bf16.mxu0 0
      %1404 = vmatpush1.bf16.msra.mxu0 0
      %1405 = vmatprep.subr.bf16.mxu0 0
      %1406 = vmatpush1.bf16.msra.mxu0 0
      %1407 = vmatprep.subr.bf16.mxu0 0
      %1408 = vmatpush1.bf16.msra.mxu0 0
      %1409 = vmatprep.subr.bf16.mxu0 0
      %1410 = vmatpush1.bf16.msra.mxu0 0
      %1411 = vmatprep.subr.bf16.mxu0 0
      %1412 = vmatpush1.bf16.msra.mxu0 0
      %1413 = vmatprep.subr.bf16.mxu0 0
      %1414 = vmatpush1.bf16.msra.mxu0 0
      %1415 = vmatprep.subr.bf16.mxu0 0
      %1416 = vmatpush1.bf16.msra.mxu0 0
      %1417 = vmatprep.subr.bf16.mxu0 0
      %1418 = vmatpush1.bf16.msra.mxu0 0
      %1419 = vmatprep.subr.bf16.mxu0 0
      %1420 = vmatpush1.bf16.msra.mxu0 0
      %1421 = vmatprep.subr.bf16.mxu0 0
      %1422 = vmatpush1.bf16.msra.mxu0 0
      %1423 = vmatprep.subr.bf16.mxu0 0
      %1424 = vmatpush1.bf16.msra.mxu0 0
      %1425 = vmatprep.subr.bf16.mxu0 0
      %1426 = vmatpush1.bf16.msra.mxu0 0
      %1427 = vmatprep.subr.bf16.mxu0 0
      %1428 = vmatpush1.bf16.msra.mxu0 0
      %1429 = vmatprep.subr.bf16.mxu0 0
      %1430 = vmatpush1.bf16.msra.mxu0 0
      %1431 = vmatprep.mubr.bf16.mxu0 0
      %1432 = vmatmul.mubr.bf16.gmra.mrb[0].mxu0 %v1394
      %v1433 = vpop.f32.mrb[0].mxu0
      %v1434 = vadd.f32 0.0, %v1433
      %v1435 = vpop.f32.mrb[0].mxu0
      %v1436 = vadd.f32 0.0, %v1435
      %v1437 = vpop.f32.mrb[0].mxu0
      %v1438 = vadd.f32 0.0, %v1437
      %v1439 = vpop.f32.mrb[0].mxu0
      %v1440 = vadd.f32 0.0, %v1439
      %1441 = vmatprep.mubr.bf16.mxu0 0
      %1442 = vmatmul.mubr.bf16.gmra.mrb[0].mxu0 %v1397
      %v1443 = vpop.f32.mrb[0].mxu0
      %v1444 = vadd.f32 0.0, %v1443
      %v1445 = vpop.f32.mrb[0].mxu0
      %v1446 = vadd.f32 0.0, %v1445
      %v1447 = vpop.f32.mrb[0].mxu0
      %v1448 = vpop.f32.mrb[0].mxu0
      %1449 = vdwg.mxu0
      %v1450 = vsub.f32 0.0, %v1444
      %v1451 = vsub.f32 0.0, %v1446
      %v1452 = vmul.f32 %v1450, 1.442695
      %v1453 = vpow.pop %v1452
      %v1454 = vmul.f32 %v1451, 1.442695
      %v1455 = vpow.pop %v1454
      %v1456 = vadd.f32 %v1453, 1.0
      %v1457 = vadd.f32 %v1455, 1.0
      %v1458 = vrcp.pop %v1456
      %v1459 = vrcp.pop %v1457
      %vm1466 = vcmask 1041408
      %v1467 = vrot.slane %v1102, 6
      %v1468 = vrot.slane %v1103, 6
      %v1469 = vrot.slane %v1104, 6
      %v1470 = vsel %vm1466, %v1467, %v1469
      %v1471 = vrot.slane %v1105, 6
      %v1472 = vsel %vm1466, %v1468, %v1471
      %v1473 = vrot.slane %v1106, 6
      %v1474 = vsel %vm1466, %v1469, %v1473
      %v1475 = vrot.slane %v1107, 6
      %v1476 = vsel %vm1466, %v1471, %v1475
      %v1485 = vrot.slane %v1458, 6
      %v1486 = vrot.slane %v1459, 6
      %v1489 = vsel %vm1466, %v1444, %v1467
      %v1490 = vsel %vm1466, %v1446, %v1468
      %vm1491 = vcmask 1043456
      %v1492 = vsel %vm1491, %v1474, %v1485
      %v1493 = vsel %vm1491, %v1476, %v1486
      %1494 = vst [vmem:[%s305] sm:$0xff] %v1434
      %1495 = vst [vmem:[%s305 + $0x8] sm:$0xff] %v1436
      %1496 = vst [vmem:[%s305 + $0x10] sm:$0xff] %v1438
      %1497 = vst [vmem:[%s305 + $0x18] sm:$0xff] %v1440
      %1498 = vst [vmem:[%s305 + $0x20] sm:$0xff] %v1489
      %1499 = vst [vmem:[%s305 + $0x28] sm:$0xff] %v1490
      %1500 = vst [vmem:[%s305 + $0x30] sm:$0xff] %v1470
      %1501 = vst [vmem:[%s305 + $0x38] sm:$0xff] %v1472
      %1502 = vst [vmem:[%s305 + $0x40] sm:$0x1f] %v1492
      %1503 = vst [vmem:[%s305 + $0x48] sm:$0x1f] %v1493
      %p1504 = scmp.lt.s32.totalorder %s19, 1
      %s1505 = scalar_select %p1504, %s19, 1
      %s1506 = smul.addr %s1505, 10
      %s1507 = smul.addr %s1506, 8
      %s1508 = scalar_lea.vmem %s8, %s1507
      // Predicated region
      $region53: #{block_forward.1} parent=51 // pred_check
        %p1509 = pneg %p210
      $region54: #{block_forward.1} parent=51 // pred_check_branch
        %1511 = sbr.rel (%p1509) target = $region56
      $region55: #{block_forward.1} parent=51 // pred_region
        _
      $region56: #{block_forward.1} parent=51 // pred_fallthru
        _
    $region52: #{block_forward.1} parent=5 // pred_fallthru
      _
    %p1512 = scmp.le.s32.totalorder 2, %s14
    // Predicated region
    $region57: #{block_forward.1} parent=5 // pred_check
      %p1513 = pneg %p1512
    $region58: #{block_forward.1} parent=5 // pred_check_branch
      %1515 = sbr.rel (%p1513) target = $region60
    $region59: #{block_forward.1} parent=5 // pred_region
      %s1516 = ssub.s32 %s14, 2
      // Predicated region
      $region61: #{block_forward.1} parent=59 // pred_check
        %p1517 = pneg %p216
      $region62: #{block_forward.1} parent=59 // pred_check_branch
        %1519 = sbr.rel (%p1517) target = $region64
      $region63: #{block_forward.1} parent=59 // pred_region
        %p1520 = scmp.lt.s32.totalorder %s20, 1
        %s1521 = scalar_select %p1520, %s20, 1
        %s1522 = smul.addr %s1521, 10
        %s1523 = smul.addr %s1522, 8
        %s1524 = scalar_lea.vmem %s8, %s1523
      $region64: #{block_forward.1} parent=59 // pred_fallthru
        _
    $region60: #{block_forward.1} parent=5 // pred_fallthru
      _
  $region6: #{block_forward.1} parent=0 // loop_footer
    %s18 = sadd.s32 1, %s14
  $region7: #{block_forward.1} parent=0 // loop_footer_branch
    %13 = sbr.rel target = $region3
  $region8: #{block_forward.1} parent=0 // loop_exit
    _

</llo_original>
